<compile_context>
chip_gen: v6e
topology: v6e:2x2x1
jax: 0.10.0
libtpu: 0.0.40
codegen_flags: <defaults>
</compile_context>

<pallas_src>
import functools

import numpy as np
import jax
import jax.numpy as jnp
from jax.experimental import pallas as pl
from jax.experimental.pallas import tpu as pltpu


# ----------------------------- shared math -----------------------------

def _mish(v):
    # x * tanh(softplus(x)) with the PyTorch threshold=20 overflow guard.
    sp = jnp.where(v > 20.0, v, jnp.log1p(jnp.exp(jnp.minimum(v, 20.0))))
    return v * jnp.tanh(sp)


# ----------------------------- Pallas kernel -----------------------------

def _fft_block_kernel(len_ref,                       # [B] int32 (scalar prefetch, SMEM)
                      x_ref,                         # [1, T, C]
                      wqkv_ref, bqkv_ref,            # [C, 3C] bf16, [1, 3C] f32 (Q pre-scaled)
                      wo_ref,                        # [C, C] bf16
                      w0_ref, b0_ref,                # [K*C, 4C] bf16, [1, 4C] f32
                      w1_ref,                        # [K, 4C, C] bf16 (per tap)
                      vec_ref,                       # [6, C] f32: bo, s_a, sh_a, b1, s_f, sh_f
                      o_ref,                         # [1, T, C]
                      *, num_heads, kernel_size):
    """One batch element: x_ref [1, T, C] -> o_ref [1, T, C]."""
    T = x_ref.shape[1]
    C = x_ref.shape[2]
    H = num_heads
    Dh = C // H
    K = kernel_size
    pad = (K - 1) // 2

    # ---- masks built in-kernel from the prefetched lengths ----
    L = len_ref[pl.program_id(0)]
    t_col = jax.lax.broadcasted_iota(jnp.int32, (T, 1), 0)
    mcol = (t_col < L).astype(jnp.float32)                             # [T, 1] 1.0 = valid frame
    t_row = jax.lax.broadcasted_iota(jnp.int32, (1, T), 1)
    key_bias = jnp.where(t_row < L, 0.0, -1e30).astype(jnp.float32)    # [1, T] additive key mask

    x = x_ref[0].astype(jnp.float32)                                   # [T, C]
    xb = x.astype(jnp.bfloat16)

    bo = vec_ref[0:1, :]
    s_attn, sh_attn = vec_ref[1:2, :], vec_ref[2:3, :]
    b1 = vec_ref[3:4, :]
    s_ffn, sh_ffn = vec_ref[4:5, :], vec_ref[5:6, :]

    # ---------------- multi-head self-attention (eval: no dropout) ----------------
    # Fused QKV projection: one MXU dot of depth C, width 3C.  1/sqrt(Dh) is pre-folded
    # into the Q columns/bias by the wrapper.
    qkv = jnp.dot(xb, wqkv_ref[...], preferred_element_type=jnp.float32) + bqkv_ref[...]
    q = qkv[:, 0:C].astype(jnp.bfloat16)
    k = qkv[:, C:2 * C].astype(jnp.bfloat16)
    v = qkv[:, 2 * C:3 * C].astype(jnp.bfloat16)

    heads = []
    for h in range(H):                                                 # H is static -> unrolled
        qh = q[:, h * Dh:(h + 1) * Dh]
        kh = k[:, h * Dh:(h + 1) * Dh]
        vh = v[:, h * Dh:(h + 1) * Dh]
        s = jax.lax.dot_general(qh, kh,
                                dimension_numbers=(((1,), (1,)), ((), ())),
                                preferred_element_type=jnp.float32)    # [T, T]
        s = s + key_bias                                               # key_padding_mask
        s = s - jnp.max(s, axis=-1, keepdims=True)
        p = jnp.exp(s)
        p = p * pl.reciprocal(jnp.sum(p, axis=-1, keepdims=True), approx=False)
        heads.append(jnp.dot(p.astype(jnp.bfloat16), vh,
                             preferred_element_type=jnp.float32))      # [T, Dh]
    ctx = jnp.concatenate(heads, axis=1).astype(jnp.bfloat16)          # [T, C]
    # Fused output projection: one dot of depth C.
    attn = jnp.dot(ctx, wo_ref[...], preferred_element_type=jnp.float32) + bo
    x1 = attn + x                                                      # residual

    # attention_norm (BatchNorm1d, eval affine) on masked input
    h1 = (x1 * mcol) * s_attn + sh_attn

    # ---------------- FFN: two 'same' 1-D convs ----------------
    def shift_time(inp, d):
        """result[t] = inp[t + d] with zero padding (static sublane slices)."""
        if d == 0:
            return inp
        if d > 0:
            z = jnp.zeros((d, inp.shape[1]), inp.dtype)
            return jnp.concatenate([inp[d:, :], z], axis=0)
        z = jnp.zeros((-d, inp.shape[1]), inp.dtype)
        return jnp.concatenate([z, inp[:T + d, :]], axis=0)

    # conv_0: Cin = C may be shallow -> fuse the K taps into one dot of depth K*C.
    inp0 = (h1 * mcol).astype(jnp.bfloat16)                            # FFN does conv_0(x*masks)
    cat = jnp.concatenate([shift_time(inp0, kk - pad) for kk in range(K)], axis=1)  # [T, K*C]
    f = jnp.dot(cat, w0_ref[...], preferred_element_type=jnp.float32) + b0_ref[...]  # [T, 4C]
    f = _mish(f)                                                       # Mish (dropout = identity)

    # conv_1: Cin = 4C is already deep -> accumulate K time-shifted dots, no lane concat.
    inp1 = (f * mcol).astype(jnp.bfloat16)                             # conv_1(x*masks)
    acc = jnp.zeros((T, C), jnp.float32) + b1
    for kk in range(K):
        acc = acc + jnp.dot(shift_time(inp1, kk - pad), w1_ref[kk],
                            preferred_element_type=jnp.float32)        # [T, C]
    f2 = acc * mcol                                                    # FFN returns x * masks
    x2 = f2 + h1                                                       # residual

    # ffn_norm (eval affine) on masked input, then final mask
    out = ((x2 * mcol) * s_ffn + sh_ffn) * mcol
    o_ref[0] = out.astype(o_ref.dtype)


# ----------------------------- wrapper -----------------------------

def fft_block_forward(params, x, lengths):
    """x: [B, C, T] float32, lengths: [B] int32 -> [B, C, T] float32."""
    B, C, T = x.shape
    H = int(params["num_heads"])
    K = int(params["kernel_size"])
    Dh = C // H
    scale = 1.0 / float(np.sqrt(Dh))

    x_tc = jnp.transpose(x, (0, 2, 1)).astype(jnp.float32)             # [B, T, C]
    lengths = lengths.astype(jnp.int32)                                # scalar prefetch arg

    bf = jnp.bfloat16

    # Fused QKV weights: column h*Dh + d of block {q,k,v} holds w{q,k,v}[h][:, d].
    def to_mat(w):                                                     # [H, C, Dh] -> [C, C]
        return jnp.transpose(w, (1, 0, 2)).reshape(C, C)

    wq, wk, wv = params["wqkv"][0], params["wqkv"][1], params["wqkv"][2]
    wqkv_flat = jnp.concatenate(
        [to_mat(wq) * scale, to_mat(wk), to_mat(wv)], axis=1).astype(bf)        # [C, 3C]
    bq = params["bqkv"][0].reshape(1, C) * scale
    bk = params["bqkv"][1].reshape(1, C)
    bv = params["bqkv"][2].reshape(1, C)
    bqkv_flat = jnp.concatenate([bq, bk, bv], axis=1).astype(jnp.float32)       # [1, 3C]

    wo_flat = params["wo"].reshape(C, C).astype(bf)                    # row h*Dh+d = wo[h][d,:]
    w0 = params["w0"].astype(bf)                                       # [K*C, 4C]
    b0 = params["b0"].astype(jnp.float32)                              # [1, 4C]
    w1_taps = params["w1"].reshape(K, 4 * C, C).astype(bf)             # per-tap [4C, C]

    # Pack the small per-channel vectors into one [6, C] constant (fewer DMA descriptors).
    vecs = jnp.concatenate(
        [params["bo"], params["s_attn"], params["sh_attn"],
         params["b1"], params["s_ffn"], params["sh_ffn"]], axis=0).astype(jnp.float32)

    kernel = functools.partial(_fft_block_kernel, num_heads=H, kernel_size=K)

    def const_spec(shape):
        nd = len(shape)
        # Grid-invariant constants: single-buffer (double-buffering buys nothing, halves
        # weight VMEM residency — matters on v7x's 64 MiB VMEM).
        return pl.BlockSpec(shape, lambda b, lens, _nd=nd: (0,) * _nd,
                            pipeline_mode=pl.Buffered(1))

    # Explicit VMEM budget sized from the actual weight/activation block sizes
    # (v5e default scoped limit is only 16 MiB).
    w_bytes = 2 * (3 * C * C + C * C + K * C * 4 * C + K * 4 * C * C)          # bf16 weights
    a_bytes = 4 * (T * 3 * C + 2 * T * T + T * 4 * C + T * K * C + 8 * T * C)  # f32 activations
    vmem_limit = int(np.clip(2 * (w_bytes + a_bytes) + (8 << 20), 16 << 20, 48 << 20))

    out = pl.pallas_call(
        kernel,
        out_shape=jax.ShapeDtypeStruct((B, T, C), jnp.float32),
        grid_spec=pltpu.PrefetchScalarGridSpec(
            num_scalar_prefetch=1,                                     # lengths -> SMEM
            grid=(B,),
            in_specs=[
                pl.BlockSpec((1, T, C), lambda b, lens: (b, 0, 0)),    # x
                const_spec((C, 3 * C)),                                # fused qkv weights
                const_spec((1, 3 * C)),                                # fused qkv bias
                const_spec((C, C)),                                    # out-proj weight
                const_spec((K * C, 4 * C)),                            # conv_0 weight (flat)
                const_spec((1, 4 * C)),                                # conv_0 bias
                const_spec((K, 4 * C, C)),                             # conv_1 weight (per tap)
                const_spec((6, C)),                                    # packed per-channel vecs
            ],
            out_specs=pl.BlockSpec((1, T, C), lambda b, lens: (b, 0, 0)),
        ),
        compiler_params=pltpu.CompilerParams(
            dimension_semantics=("parallel",),
            vmem_limit_bytes=vmem_limit),
    )(lengths, x_tc, wqkv_flat, bqkv_flat, wo_flat, w0, b0, w1_taps, vecs)

    return jnp.transpose(out, (0, 2, 1))                               # [B, C, T]


# ----------------------------- pure-JAX reference -----------------------------

def _conv1d_same_ref(x_btc, w_flat, b, K):
    pad = (K - 1) // 2
    B, T, Cin = x_btc.shape
    xp = jnp.pad(x_btc, ((0, 0), (pad, K - 1 - pad), (0, 0)))
    cat = jnp.concatenate([xp[:, kk:kk + T, :] for kk in range(K)], axis=-1)    # [B, T, K*Cin]
    return jnp.einsum("btk,kc->btc", cat, w_flat) + b


def fft_block_reference(params, x, lengths):
    B, C, T = x.shape
    H = int(params["num_heads"])
    K = int(params["kernel_size"])
    Dh = C // H

    xt = jnp.transpose(x, (0, 2, 1)).astype(jnp.float32)               # [B, T, C]
    valid = (jnp.arange(T, dtype=jnp.int32)[None, :]
             < lengths[:, None]).astype(jnp.float32)                   # [B, T]
    mc = valid[:, :, None]                                             # [B, T, 1]

    wq, wk, wv = params["wqkv"][0], params["wqkv"][1], params["wqkv"][2]    # [H, C, Dh]
    bq = params["bqkv"][0][:, 0, :]                                         # [H, Dh]
    bk = params["bqkv"][1][:, 0, :]
    bv = params["bqkv"][2][:, 0, :]

    q = jnp.einsum("btc,hcd->bhtd", xt, wq) + bq[None, :, None, :]
    k = jnp.einsum("btc,hcd->bhtd", xt, wk) + bk[None, :, None, :]
    v = jnp.einsum("btc,hcd->bhtd", xt, wv) + bv[None, :, None, :]
    s = jnp.einsum("bhtd,bhsd->bhts", q, k) / np.sqrt(Dh)
    s = jnp.where(valid[:, None, None, :] > 0.5, s, -1e30)
    p = jax.nn.softmax(s, axis=-1)
    o = jnp.einsum("bhts,bhsd->bhtd", p, v)
    a = jnp.einsum("bhtd,hdc->btc", o, params["wo"]) + params["bo"]
    x1 = a + xt

    h1 = (x1 * mc) * params["s_attn"] + params["sh_attn"]

    f = _conv1d_same_ref(h1 * mc, params["w0"], params["b0"], K)
    f = _mish(f)
    f = _conv1d_same_ref(f * mc, params["w1"], params["b1"], K)
    f = f * mc
    x2 = f + h1

    out = ((x2 * mc) * params["s_ffn"] + params["sh_ffn"]) * mc
    return jnp.transpose(out, (0, 2, 1))


# ----------------------------- parameter init -----------------------------

def _bn_fold(key, c, eps=1e-5):
    kg, kb, km, kv = jax.random.split(key, 4)
    gamma = 1.0 + 0.1 * jax.random.normal(kg, (1, c), jnp.float32)
    beta = 0.1 * jax.random.normal(kb, (1, c), jnp.float32)
    mean = 0.1 * jax.random.normal(km, (1, c), jnp.float32)
    var = 1.0 + 0.1 * jnp.abs(jax.random.normal(kv, (1, c), jnp.float32))
    scale = gamma * jax.lax.rsqrt(var + eps)
    shift = beta - mean * scale
    return scale, shift


def init_params(channels, num_heads, kernel_size, seed=0):
    C, H, K = channels, num_heads, kernel_size
    Dh = C // H
    key = jax.random.PRNGKey(seed)
    ks = jax.random.split(key, 10)

    wqkv = jax.random.normal(ks[0], (3, H, C, Dh), jnp.float32) / np.sqrt(C)
    bqkv = 0.02 * jax.random.normal(ks[1], (3, H, 1, Dh), jnp.float32)
    wo = jax.random.normal(ks[2], (H, Dh, C), jnp.float32) / np.sqrt(C)
    bo = 0.02 * jax.random.normal(ks[3], (1, C), jnp.float32)
    s_attn, sh_attn = _bn_fold(ks[4], C)

    w0 = jax.random.normal(ks[5], (K * C, 4 * C), jnp.float32) / np.sqrt(K * C)
    b0 = 0.02 * jax.random.normal(ks[6], (1, 4 * C), jnp.float32)
    w1 = jax.random.normal(ks[7], (K * 4 * C, C), jnp.float32) / np.sqrt(K * 4 * C)
    b1 = 0.02 * jax.random.normal(ks[8], (1, C), jnp.float32)
    s_ffn, sh_ffn = _bn_fold(ks[9], C)

    return dict(wqkv=wqkv, bqkv=bqkv, wo=wo, bo=bo,
                s_attn=s_attn, sh_attn=sh_attn,
                w0=w0, b0=b0, w1=w1, b1=b1,
                s_ffn=s_ffn, sh_ffn=sh_ffn,
                num_heads=int(H), kernel_size=int(K))


# ----------------------------- demo -----------------------------

if __name__ == "__main__":
    B = 2        # batch
    C = 32       # channels (embed dim)
    H = 2        # num_head
    T = 16       # time
    K = 3        # feedforward_kernel_size

    params = init_params(channels=C, num_heads=H, kernel_size=K, seed=0)

    key = jax.random.PRNGKey(0)
    kx, _ = jax.random.split(key)
    x = jax.random.normal(kx, (B, C, T), jnp.float32)          # [Batch, Dim, Time]
    lengths = jnp.array([T, T - 5], dtype=jnp.int32)           # second sequence is padded

    out = fft_block_forward(params, x, lengths)
    out = jax.block_until_ready(out)

    ref = fft_block_reference(params, x, lengths)
    ref = jax.block_until_ready(ref)

    assert out.shape == (B, C, T)
    assert bool(jnp.all(jnp.isfinite(out)))
    # padded frames must be exactly zero (final * masks)
    assert bool(jnp.all(out[1, :, T - 5:] == 0.0))
    # bf16 matmuls vs f32 reference -> loose tolerance
    np.testing.assert_allclose(np.asarray(out), np.asarray(ref), atol=1e-1, rtol=1e-1)

    print("KERNEL_OK")
</pallas_src>

<mosaic_0001>
module attributes {stable_mosaic.version = 11 : i64} {
  func.func @_fft_block_kernel(%arg0: i32, %arg1: memref<2xi32, #tpu.memory_space<smem>>, %arg2: memref<1x16x32xf32, #tpu.memory_space<vmem>>, %arg3: memref<32x96xbf16, #tpu.memory_space<vmem>>, %arg4: memref<1x96xf32, #tpu.memory_space<vmem>>, %arg5: memref<32x32xbf16, #tpu.memory_space<vmem>>, %arg6: memref<96x128xbf16, #tpu.memory_space<vmem>>, %arg7: memref<1x128xf32, #tpu.memory_space<vmem>>, %arg8: memref<3x128x32xbf16, #tpu.memory_space<vmem>>, %arg9: memref<6x32xf32, #tpu.memory_space<vmem>>, %arg10: memref<1x16x32xf32, #tpu.memory_space<vmem>>) attributes {dimension_semantics = [#tpu.dimension_semantics<parallel>], iteration_bounds = array<i64: 2>, scalar_prefetch = 1 : i64, scratch_operands = 0 : i64, tpu.core_type = #tpu.core_type<tc>, window_params = [{transform_indices = @transform_0, window_bounds = array<i64: 1, 16, 32>}, {pipeline_mode = #tpu.pipeline_mode<synchronous>, transform_indices = @transform_1, window_bounds = array<i64: 32, 96>}, {pipeline_mode = #tpu.pipeline_mode<synchronous>, transform_indices = @transform_2, window_bounds = array<i64: 1, 96>}, {pipeline_mode = #tpu.pipeline_mode<synchronous>, transform_indices = @transform_3, window_bounds = array<i64: 32, 32>}, {pipeline_mode = #tpu.pipeline_mode<synchronous>, transform_indices = @transform_4, window_bounds = array<i64: 96, 128>}, {pipeline_mode = #tpu.pipeline_mode<synchronous>, transform_indices = @transform_5, window_bounds = array<i64: 1, 128>}, {pipeline_mode = #tpu.pipeline_mode<synchronous>, transform_indices = @transform_6, window_bounds = array<i64: 3, 128, 32>}, {pipeline_mode = #tpu.pipeline_mode<synchronous>, transform_indices = @transform_7, window_bounds = array<i64: 6, 32>}, {transform_indices = @transform_8, window_bounds = array<i64: 1, 16, 32>}]} {
    %0 = arith.index_cast %arg0 : i32 to index
    %1 = memref.load %arg1[%0] : memref<2xi32, #tpu.memory_space<smem>>
    %2 = tpu.iota {dimensions = array<i32: 0>} : vector<16x1xi32>
    %3 = vector.broadcast %1 : i32 to vector<16x1xi32>
    %4 = arith.cmpi slt, %2, %3 : vector<16x1xi32>
    %5 = arith.extui %4 : vector<16x1xi1> to vector<16x1xi32>
    %6 = arith.sitofp %5 : vector<16x1xi32> to vector<16x1xf32>
    %7 = tpu.iota {dimensions = array<i32: 1>} : vector<1x16xi32>
    %8 = vector.broadcast %1 : i32 to vector<1x16xi32>
    %9 = arith.cmpi slt, %7, %8 : vector<1x16xi32>
    %cst = arith.constant 0.000000e+00 : f32
    %cst_0 = arith.constant -1.000000e+30 : f32
    %10 = vector.broadcast %cst : f32 to vector<1x16xf32>
    %11 = vector.broadcast %cst_0 : f32 to vector<1x16xf32>
    %12 = arith.select %9, %10, %11 : vector<1x16xi1>, vector<1x16xf32>
    %c0 = arith.constant 0 : index
    %c0_1 = arith.constant 0 : index
    %c0_2 = arith.constant 0 : index
    %13 = vector.load %arg2[%c0, %c0_1, %c0_2] : memref<1x16x32xf32, #tpu.memory_space<vmem>>, vector<1x16x32xf32>
    %14 = vector.shape_cast %13 : vector<1x16x32xf32> to vector<16x32xf32>
    %15 = arith.truncf %14 : vector<16x32xf32> to vector<16x32xbf16>
    %c0_3 = arith.constant 0 : index
    %c0_4 = arith.constant 0 : index
    %16 = vector.load %arg9[%c0_3, %c0_4] : memref<6x32xf32, #tpu.memory_space<vmem>>, vector<1x32xf32>
    %c1 = arith.constant 1 : index
    %c0_5 = arith.constant 0 : index
    %17 = vector.load %arg9[%c1, %c0_5] : memref<6x32xf32, #tpu.memory_space<vmem>>, vector<1x32xf32>
    %c2 = arith.constant 2 : index
    %c0_6 = arith.constant 0 : index
    %18 = vector.load %arg9[%c2, %c0_6] : memref<6x32xf32, #tpu.memory_space<vmem>>, vector<1x32xf32>
    %c3 = arith.constant 3 : index
    %c0_7 = arith.constant 0 : index
    %19 = vector.load %arg9[%c3, %c0_7] : memref<6x32xf32, #tpu.memory_space<vmem>>, vector<1x32xf32>
    %c4 = arith.constant 4 : index
    %c0_8 = arith.constant 0 : index
    %20 = vector.load %arg9[%c4, %c0_8] : memref<6x32xf32, #tpu.memory_space<vmem>>, vector<1x32xf32>
    %c5 = arith.constant 5 : index
    %c0_9 = arith.constant 0 : index
    %21 = vector.load %arg9[%c5, %c0_9] : memref<6x32xf32, #tpu.memory_space<vmem>>, vector<1x32xf32>
    %c0_10 = arith.constant 0 : index
    %c0_11 = arith.constant 0 : index
    %22 = vector.load %arg3[%c0_10, %c0_11] : memref<32x96xbf16, #tpu.memory_space<vmem>>, vector<32x96xbf16>
    %cst_12 = arith.constant dense<0.000000e+00> : vector<16x96xf32>
    %23 = tpu.matmul %15, %22, %cst_12 {dimension_numbers = #tpu.dot_dimension_numbers<[1], [0], [0], [1], [0, 0, 1, 1], [], []>} : vector<16x32xbf16>, vector<32x96xbf16>, vector<16x96xf32> -> vector<16x96xf32>
    %c0_13 = arith.constant 0 : index
    %c0_14 = arith.constant 0 : index
    %24 = vector.load %arg4[%c0_13, %c0_14] : memref<1x96xf32, #tpu.memory_space<vmem>>, vector<1x96xf32>
    %25 = vector.broadcast %24 : vector<1x96xf32> to vector<16x96xf32>
    %26 = arith.addf %23, %25 : vector<16x96xf32>
    %27 = vector.extract_strided_slice %26 {offsets = [0, 0], sizes = [16, 32], strides = [1, 1]} : vector<16x96xf32> to vector<16x32xf32>
    %28 = arith.truncf %27 : vector<16x32xf32> to vector<16x32xbf16>
    %29 = vector.extract_strided_slice %26 {offsets = [0, 32], sizes = [16, 32], strides = [1, 1]} : vector<16x96xf32> to vector<16x32xf32>
    %30 = arith.truncf %29 : vector<16x32xf32> to vector<16x32xbf16>
    %31 = vector.extract_strided_slice %26 {offsets = [0, 64], sizes = [16, 32], strides = [1, 1]} : vector<16x96xf32> to vector<16x32xf32>
    %32 = arith.truncf %31 : vector<16x32xf32> to vector<16x32xbf16>
    %33 = vector.extract_strided_slice %28 {offsets = [0, 0], sizes = [16, 16], strides = [1, 1]} : vector<16x32xbf16> to vector<16x16xbf16>
    %34 = vector.extract_strided_slice %30 {offsets = [0, 0], sizes = [16, 16], strides = [1, 1]} : vector<16x32xbf16> to vector<16x16xbf16>
    %35 = vector.extract_strided_slice %32 {offsets = [0, 0], sizes = [16, 16], strides = [1, 1]} : vector<16x32xbf16> to vector<16x16xbf16>
    %cst_15 = arith.constant dense<0.000000e+00> : vector<16x16xf32>
    %36 = tpu.matmul %33, %34, %cst_15 {dimension_numbers = #tpu.dot_dimension_numbers<[1], [1], [0], [0], [0, 0, 1, 0], [], []>} : vector<16x16xbf16>, vector<16x16xbf16>, vector<16x16xf32> -> vector<16x16xf32>
    %37 = vector.broadcast %12 : vector<1x16xf32> to vector<16x16xf32>
    %38 = arith.addf %36, %37 : vector<16x16xf32>
    %cst_16 = arith.constant dense<0xFF800000> : vector<16xf32>
    %39 = vector.multi_reduction <maximumf>, %38, %cst_16 [1] : vector<16x16xf32> to vector<16xf32>
    %40 = vector.shape_cast %39 : vector<16xf32> to vector<16x1xf32>
    %41 = vector.broadcast %40 : vector<16x1xf32> to vector<16x16xf32>
    %42 = arith.subf %38, %41 : vector<16x16xf32>
    %43 = math.exp %42 : vector<16x16xf32>
    %cst_17 = arith.constant dense<0.000000e+00> : vector<16xf32>
    %44 = vector.multi_reduction <add>, %43, %cst_17 [1] : vector<16x16xf32> to vector<16xf32>
    %45 = vector.shape_cast %44 : vector<16xf32> to vector<16x1xf32>
    %46 = tpu.reciprocal %45 : vector<16x1xf32> -> vector<16x1xf32>
    %47 = vector.broadcast %46 : vector<16x1xf32> to vector<16x16xf32>
    %48 = arith.mulf %43, %47 : vector<16x16xf32>
    %49 = arith.truncf %48 : vector<16x16xf32> to vector<16x16xbf16>
    %cst_18 = arith.constant dense<0.000000e+00> : vector<16x16xf32>
    %50 = tpu.matmul %49, %35, %cst_18 {dimension_numbers = #tpu.dot_dimension_numbers<[1], [0], [0], [1], [0, 0, 1, 1], [], []>} : vector<16x16xbf16>, vector<16x16xbf16>, vector<16x16xf32> -> vector<16x16xf32>
    %51 = vector.extract_strided_slice %28 {offsets = [0, 16], sizes = [16, 16], strides = [1, 1]} : vector<16x32xbf16> to vector<16x16xbf16>
    %52 = vector.extract_strided_slice %30 {offsets = [0, 16], sizes = [16, 16], strides = [1, 1]} : vector<16x32xbf16> to vector<16x16xbf16>
    %53 = vector.extract_strided_slice %32 {offsets = [0, 16], sizes = [16, 16], strides = [1, 1]} : vector<16x32xbf16> to vector<16x16xbf16>
    %cst_19 = arith.constant dense<0.000000e+00> : vector<16x16xf32>
    %54 = tpu.matmul %51, %52, %cst_19 {dimension_numbers = #tpu.dot_dimension_numbers<[1], [1], [0], [0], [0, 0, 1, 0], [], []>} : vector<16x16xbf16>, vector<16x16xbf16>, vector<16x16xf32> -> vector<16x16xf32>
    %55 = vector.broadcast %12 : vector<1x16xf32> to vector<16x16xf32>
    %56 = arith.addf %54, %55 : vector<16x16xf32>
    %cst_20 = arith.constant dense<0xFF800000> : vector<16xf32>
    %57 = vector.multi_reduction <maximumf>, %56, %cst_20 [1] : vector<16x16xf32> to vector<16xf32>
    %58 = vector.shape_cast %57 : vector<16xf32> to vector<16x1xf32>
    %59 = vector.broadcast %58 : vector<16x1xf32> to vector<16x16xf32>
    %60 = arith.subf %56, %59 : vector<16x16xf32>
    %61 = math.exp %60 : vector<16x16xf32>
    %cst_21 = arith.constant dense<0.000000e+00> : vector<16xf32>
    %62 = vector.multi_reduction <add>, %61, %cst_21 [1] : vector<16x16xf32> to vector<16xf32>
    %63 = vector.shape_cast %62 : vector<16xf32> to vector<16x1xf32>
    %64 = tpu.reciprocal %63 : vector<16x1xf32> -> vector<16x1xf32>
    %65 = vector.broadcast %64 : vector<16x1xf32> to vector<16x16xf32>
    %66 = arith.mulf %61, %65 : vector<16x16xf32>
    %67 = arith.truncf %66 : vector<16x16xf32> to vector<16x16xbf16>
    %cst_22 = arith.constant dense<0.000000e+00> : vector<16x16xf32>
    %68 = tpu.matmul %67, %53, %cst_22 {dimension_numbers = #tpu.dot_dimension_numbers<[1], [0], [0], [1], [0, 0, 1, 1], [], []>} : vector<16x16xbf16>, vector<16x16xbf16>, vector<16x16xf32> -> vector<16x16xf32>
    %69 = tpu.concatenate %50, %68 in 1 : vector<16x16xf32>, vector<16x16xf32> -> vector<16x32xf32>
    %70 = arith.truncf %69 : vector<16x32xf32> to vector<16x32xbf16>
    %c0_23 = arith.constant 0 : index
    %c0_24 = arith.constant 0 : index
    %71 = vector.load %arg5[%c0_23, %c0_24] : memref<32x32xbf16, #tpu.memory_space<vmem>>, vector<32x32xbf16>
    %cst_25 = arith.constant dense<0.000000e+00> : vector<16x32xf32>
    %72 = tpu.matmul %70, %71, %cst_25 {dimension_numbers = #tpu.dot_dimension_numbers<[1], [0], [0], [1], [0, 0, 1, 1], [], []>} : vector<16x32xbf16>, vector<32x32xbf16>, vector<16x32xf32> -> vector<16x32xf32>
    %73 = vector.broadcast %16 : vector<1x32xf32> to vector<16x32xf32>
    %74 = arith.addf %72, %73 : vector<16x32xf32>
    %75 = arith.addf %74, %14 : vector<16x32xf32>
    %76 = vector.broadcast %6 : vector<16x1xf32> to vector<16x32xf32>
    %77 = arith.mulf %75, %76 : vector<16x32xf32>
    %78 = vector.broadcast %17 : vector<1x32xf32> to vector<16x32xf32>
    %79 = arith.mulf %77, %78 : vector<16x32xf32>
    %80 = vector.broadcast %18 : vector<1x32xf32> to vector<16x32xf32>
    %81 = arith.addf %79, %80 : vector<16x32xf32>
    %82 = vector.broadcast %6 : vector<16x1xf32> to vector<16x32xf32>
    %83 = arith.mulf %81, %82 : vector<16x32xf32>
    %84 = arith.truncf %83 : vector<16x32xf32> to vector<16x32xbf16>
    %cst_26 = arith.constant 0.000000e+00 : bf16
    %85 = vector.broadcast %cst_26 : bf16 to vector<1x32xbf16>
    %86 = vector.extract_strided_slice %84 {offsets = [0, 0], sizes = [15, 32], strides = [1, 1]} : vector<16x32xbf16> to vector<15x32xbf16>
    %87 = tpu.concatenate %85, %86 in 0 : vector<1x32xbf16>, vector<15x32xbf16> -> vector<16x32xbf16>
    %cst_27 = arith.constant 0.000000e+00 : bf16
    %88 = vector.broadcast %cst_27 : bf16 to vector<1x32xbf16>
    %89 = vector.extract_strided_slice %84 {offsets = [1, 0], sizes = [15, 32], strides = [1, 1]} : vector<16x32xbf16> to vector<15x32xbf16>
    %90 = tpu.concatenate %89, %88 in 0 : vector<15x32xbf16>, vector<1x32xbf16> -> vector<16x32xbf16>
    %91 = tpu.concatenate %87, %84, %90 in 1 : vector<16x32xbf16>, vector<16x32xbf16>, vector<16x32xbf16> -> vector<16x96xbf16>
    %c0_28 = arith.constant 0 : index
    %c0_29 = arith.constant 0 : index
    %92 = vector.load %arg6[%c0_28, %c0_29] : memref<96x128xbf16, #tpu.memory_space<vmem>>, vector<96x128xbf16>
    %cst_30 = arith.constant dense<0.000000e+00> : vector<16x128xf32>
    %93 = tpu.matmul %91, %92, %cst_30 {dimension_numbers = #tpu.dot_dimension_numbers<[1], [0], [0], [1], [0, 0, 1, 1], [], []>} : vector<16x96xbf16>, vector<96x128xbf16>, vector<16x128xf32> -> vector<16x128xf32>
    %c0_31 = arith.constant 0 : index
    %c0_32 = arith.constant 0 : index
    %94 = vector.load %arg7[%c0_31, %c0_32] : memref<1x128xf32, #tpu.memory_space<vmem>>, vector<1x128xf32>
    %95 = vector.broadcast %94 : vector<1x128xf32> to vector<16x128xf32>
    %96 = arith.addf %93, %95 : vector<16x128xf32>
    %cst_33 = arith.constant 2.000000e+01 : f32
    %97 = vector.broadcast %cst_33 : f32 to vector<16x128xf32>
    %98 = arith.cmpf ogt, %96, %97 : vector<16x128xf32>
    %cst_34 = arith.constant 2.000000e+01 : f32
    %99 = vector.broadcast %cst_34 : f32 to vector<16x128xf32>
    %100 = arith.minimumf %96, %99 : vector<16x128xf32>
    %101 = math.exp %100 : vector<16x128xf32>
    %102 = math.log1p %101 : vector<16x128xf32>
    %103 = arith.select %98, %96, %102 : vector<16x128xi1>, vector<16x128xf32>
    %104 = math.tanh %103 : vector<16x128xf32>
    %105 = arith.mulf %96, %104 : vector<16x128xf32>
    %106 = vector.broadcast %6 : vector<16x1xf32> to vector<16x128xf32>
    %107 = arith.mulf %105, %106 : vector<16x128xf32>
    %108 = arith.truncf %107 : vector<16x128xf32> to vector<16x128xbf16>
    %cst_35 = arith.constant 0.000000e+00 : f32
    %109 = vector.broadcast %cst_35 : f32 to vector<16x32xf32>
    %110 = vector.broadcast %19 : vector<1x32xf32> to vector<16x32xf32>
    %111 = arith.addf %109, %110 : vector<16x32xf32>
    %cst_36 = arith.constant 0.000000e+00 : bf16
    %112 = vector.broadcast %cst_36 : bf16 to vector<1x128xbf16>
    %113 = vector.extract_strided_slice %108 {offsets = [0, 0], sizes = [15, 128], strides = [1, 1]} : vector<16x128xbf16> to vector<15x128xbf16>
    %114 = tpu.concatenate %112, %113 in 0 : vector<1x128xbf16>, vector<15x128xbf16> -> vector<16x128xbf16>
    %c0_37 = arith.constant 0 : index
    %c0_38 = arith.constant 0 : index
    %c0_39 = arith.constant 0 : index
    %115 = vector.load %arg8[%c0_37, %c0_38, %c0_39] : memref<3x128x32xbf16, #tpu.memory_space<vmem>>, vector<1x128x32xbf16>
    %116 = vector.shape_cast %115 : vector<1x128x32xbf16> to vector<128x32xbf16>
    %cst_40 = arith.constant dense<0.000000e+00> : vector<16x32xf32>
    %117 = tpu.matmul %114, %116, %cst_40 {dimension_numbers = #tpu.dot_dimension_numbers<[1], [0], [0], [1], [0, 0, 1, 1], [], []>} : vector<16x128xbf16>, vector<128x32xbf16>, vector<16x32xf32> -> vector<16x32xf32>
    %118 = arith.addf %111, %117 : vector<16x32xf32>
    %c1_41 = arith.constant 1 : index
    %c0_42 = arith.constant 0 : index
    %c0_43 = arith.constant 0 : index
    %119 = vector.load %arg8[%c1_41, %c0_42, %c0_43] : memref<3x128x32xbf16, #tpu.memory_space<vmem>>, vector<1x128x32xbf16>
    %120 = vector.shape_cast %119 : vector<1x128x32xbf16> to vector<128x32xbf16>
    %cst_44 = arith.constant dense<0.000000e+00> : vector<16x32xf32>
    %121 = tpu.matmul %108, %120, %cst_44 {dimension_numbers = #tpu.dot_dimension_numbers<[1], [0], [0], [1], [0, 0, 1, 1], [], []>} : vector<16x128xbf16>, vector<128x32xbf16>, vector<16x32xf32> -> vector<16x32xf32>
    %122 = arith.addf %118, %121 : vector<16x32xf32>
    %cst_45 = arith.constant 0.000000e+00 : bf16
    %123 = vector.broadcast %cst_45 : bf16 to vector<1x128xbf16>
    %124 = vector.extract_strided_slice %108 {offsets = [1, 0], sizes = [15, 128], strides = [1, 1]} : vector<16x128xbf16> to vector<15x128xbf16>
    %125 = tpu.concatenate %124, %123 in 0 : vector<15x128xbf16>, vector<1x128xbf16> -> vector<16x128xbf16>
    %c2_46 = arith.constant 2 : index
    %c0_47 = arith.constant 0 : index
    %c0_48 = arith.constant 0 : index
    %126 = vector.load %arg8[%c2_46, %c0_47, %c0_48] : memref<3x128x32xbf16, #tpu.memory_space<vmem>>, vector<1x128x32xbf16>
    %127 = vector.shape_cast %126 : vector<1x128x32xbf16> to vector<128x32xbf16>
    %cst_49 = arith.constant dense<0.000000e+00> : vector<16x32xf32>
    %128 = tpu.matmul %125, %127, %cst_49 {dimension_numbers = #tpu.dot_dimension_numbers<[1], [0], [0], [1], [0, 0, 1, 1], [], []>} : vector<16x128xbf16>, vector<128x32xbf16>, vector<16x32xf32> -> vector<16x32xf32>
    %129 = arith.addf %122, %128 : vector<16x32xf32>
    %130 = vector.broadcast %6 : vector<16x1xf32> to vector<16x32xf32>
    %131 = arith.mulf %129, %130 : vector<16x32xf32>
    %132 = arith.addf %131, %81 : vector<16x32xf32>
    %133 = vector.broadcast %6 : vector<16x1xf32> to vector<16x32xf32>
    %134 = arith.mulf %132, %133 : vector<16x32xf32>
    %135 = vector.broadcast %20 : vector<1x32xf32> to vector<16x32xf32>
    %136 = arith.mulf %134, %135 : vector<16x32xf32>
    %137 = vector.broadcast %21 : vector<1x32xf32> to vector<16x32xf32>
    %138 = arith.addf %136, %137 : vector<16x32xf32>
    %139 = vector.broadcast %6 : vector<16x1xf32> to vector<16x32xf32>
    %140 = arith.mulf %138, %139 : vector<16x32xf32>
    %c0_50 = arith.constant 0 : index
    %c0_51 = arith.constant 0 : index
    %c0_52 = arith.constant 0 : index
    %141 = vector.load %arg10[%c0_50, %c0_51, %c0_52] : memref<1x16x32xf32, #tpu.memory_space<vmem>>, vector<1x16x32xf32>
    %142 = vector.shape_cast %141 : vector<1x16x32xf32> to vector<16x32xf32>
    %143 = vector.shape_cast %140 : vector<16x32xf32> to vector<1x16x32xf32>
    tpu.vector_store %arg10[%c0_50, %c0_51, %c0_52], %143 {strides = array<i32>} : memref<1x16x32xf32, #tpu.memory_space<vmem>>, vector<1x16x32xf32>,
    return
  }
  func.func @transform_0(%arg0: i32, %arg1: memref<2xi32, #tpu.memory_space<smem>>) -> (i32, i32, i32) {
    %c0_i32 = arith.constant 0 : i32
    %c0_i32_0 = arith.constant 0 : i32
    %c0_i32_1 = arith.constant 0 : i32
    return %arg0, %c0_i32, %c0_i32_0 : i32, i32, i32
  }
  func.func @transform_1(%arg0: i32, %arg1: memref<2xi32, #tpu.memory_space<smem>>) -> (i32, i32) {
    %c0_i32 = arith.constant 0 : i32
    %c0_i32_0 = arith.constant 0 : i32
    %c0_i32_1 = arith.constant 0 : i32
    return %c0_i32, %c0_i32_0 : i32, i32
  }
  func.func @transform_2(%arg0: i32, %arg1: memref<2xi32, #tpu.memory_space<smem>>) -> (i32, i32) {
    %c0_i32 = arith.constant 0 : i32
    %c0_i32_0 = arith.constant 0 : i32
    %c0_i32_1 = arith.constant 0 : i32
    return %c0_i32, %c0_i32_0 : i32, i32
  }
  func.func @transform_3(%arg0: i32, %arg1: memref<2xi32, #tpu.memory_space<smem>>) -> (i32, i32) {
    %c0_i32 = arith.constant 0 : i32
    %c0_i32_0 = arith.constant 0 : i32
    %c0_i32_1 = arith.constant 0 : i32
    return %c0_i32, %c0_i32_0 : i32, i32
  }
  func.func @transform_4(%arg0: i32, %arg1: memref<2xi32, #tpu.memory_space<smem>>) -> (i32, i32) {
    %c0_i32 = arith.constant 0 : i32
    %c0_i32_0 = arith.constant 0 : i32
    %c0_i32_1 = arith.constant 0 : i32
    return %c0_i32, %c0_i32_0 : i32, i32
  }
  func.func @transform_5(%arg0: i32, %arg1: memref<2xi32, #tpu.memory_space<smem>>) -> (i32, i32) {
    %c0_i32 = arith.constant 0 : i32
    %c0_i32_0 = arith.constant 0 : i32
    %c0_i32_1 = arith.constant 0 : i32
    return %c0_i32, %c0_i32_0 : i32, i32
  }
  func.func @transform_6(%arg0: i32, %arg1: memref<2xi32, #tpu.memory_space<smem>>) -> (i32, i32, i32) {
    %c0_i32 = arith.constant 0 : i32
    %c0_i32_0 = arith.constant 0 : i32
    %c0_i32_1 = arith.constant 0 : i32
    %c0_i32_2 = arith.constant 0 : i32
    return %c0_i32, %c0_i32_0, %c0_i32_1 : i32, i32, i32
  }
  func.func @transform_7(%arg0: i32, %arg1: memref<2xi32, #tpu.memory_space<smem>>) -> (i32, i32) {
    %c0_i32 = arith.constant 0 : i32
    %c0_i32_0 = arith.constant 0 : i32
    %c0_i32_1 = arith.constant 0 : i32
    return %c0_i32, %c0_i32_0 : i32, i32
  }
  func.func @transform_8(%arg0: i32, %arg1: memref<2xi32, #tpu.memory_space<smem>>) -> (i32, i32, i32) {
    %c0_i32 = arith.constant 0 : i32
    %c0_i32_0 = arith.constant 0 : i32
    %c0_i32_1 = arith.constant 0 : i32
    return %arg0, %c0_i32, %c0_i32_0 : i32, i32, i32
  }
}

</mosaic_0001>

<llo_original>
// kernel: tpu_custom_call.1
$region0: #{tpu_custom_call.1}
  #allocation0 [shape = 'u32[]', space=smem, size = 0x4, offset = 0x4, fixed_abs, tag = 'smem constant byte address 0x4 - core index']
  #allocation1 [shape = 'u32[144,128]{1,0:T(1,128)}', space=vmem, size = 0x12000, scoped, tag = 'internal scratch']
  #allocation2 [shape = 's32[1]{0}', space=sflag, size = 0x4, scoped, tag = 'scoped memory for tpu_custom_call.1']
  #allocation3 [shape = 'u8[512]{0}', space=smem, size = 0x200, scoped, tag = 'prefetched SMEM operand 0']
  %s0 = inlined_call_operand.vmem [shape: s32[2], index: 0, kind: input, shape index: {}]
  %s1 = inlined_call_operand.vmem [shape: f32[2,16,32], index: 1, kind: input, shape index: {}]
  %s2 = inlined_call_operand.vmem [shape: bf16[32,96], index: 2, kind: input, shape index: {}]
  %s3 = inlined_call_operand.vmem [shape: f32[1,96], index: 3, kind: input, shape index: {}]
  %s4 = inlined_call_operand.vmem [shape: bf16[32,32], index: 4, kind: input, shape index: {}]
  %s5 = inlined_call_operand.vmem [shape: bf16[96,128], index: 5, kind: input, shape index: {}]
  %s6 = inlined_call_operand.vmem [shape: f32[1,128], index: 6, kind: input, shape index: {}]
  %s7 = inlined_call_operand.vmem [shape: bf16[3,128,32], index: 7, kind: input, shape index: {}]
  %s8 = inlined_call_operand.vmem [shape: f32[6,32], index: 8, kind: input, shape index: {}]
  %s9 = inlined_call_operand.hbm [shape: f32[2,16,32], index: 9, kind: output, shape index: {}]
  %s10 = sld [smem:[#allocation0]]
  $region65: #{tpu_custom_call.1} parent=0
    _
  %s12 = ssub.s32 1, %s10
  %s13 = scalar_select 0, %s12, %s10
  %s14 = sshll.u32 %s0, 4
  %s15 = int_to_ptr.vmem [resolvable:$true] %s14
  %17 = dma.vmem_to_smem %s15, 16, [#allocation3], [#allocation2]
  %18 = dma.done [#allocation2], 16
  %19 = sfence
  $region1: #{tpu_custom_call.1} parent=0
    #allocation4 [shape = 'u8[16384]{0}', space=vmem, size = 0x4000, scoped, tag = 'output window, operand 0']
    #allocation5 [shape = 's32[2]{0}', space=sflag, size = 0x8, scoped, tag = 'scoped memory for tpu_custom_call.1']
    %20 = vsyncpa [#allocation5], 0
    %s21 = scalar_lea.sflag [#allocation5], 1
    %22 = vsyncpa %s21, 0
    loop: start=0, step=1, limit=4
    $region2: #{tpu_custom_call.1} parent=1 // loop_pre_header
      _
    $region3: #{tpu_custom_call.1} parent=1 // loop_header
      %s24 = sphi 0, %s28
      %p25 = scmp.ge.s32.totalorder %s24, 4
      %s34 = sphi 0, %s36
      %s37 = sphi 0, %s34
      %s38 = sphi 0, %s37
      %s54 = sphi 0, %s38
      %s58 = sphi 0, %s58
      %s60 = sphi 0, %s58
      %s61 = sphi 0, %s60
      %s75 = sphi 0, %s61
      %s79 = sphi 0, %s79
      %s81 = sphi 0, %s79
      %s82 = sphi 0, %s81
      %s96 = sphi 0, %s82
      %s100 = sphi 0, %s100
      %s102 = sphi 0, %s100
      %s103 = sphi 0, %s102
      %s117 = sphi 0, %s103
      %s121 = sphi 0, %s121
      %s123 = sphi 0, %s121
      %s124 = sphi 0, %s123
      %s138 = sphi 0, %s124
      %s142 = sphi 0, %s142
      %s144 = sphi 0, %s142
      %s145 = sphi 0, %s144
      %s159 = sphi 0, %s145
      %s163 = sphi 0, %s163
      %s165 = sphi 0, %s163
      %s166 = sphi 0, %s165
      %s180 = sphi 0, %s166
      %s184 = sphi 0, %s184
      %s186 = sphi 0, %s184
      %s187 = sphi 0, %s186
      %s201 = sphi 0, %s187
      %s207 = sphi 0, %s209
      %s210 = sphi 0, %s207
      %s211 = sphi 0, %s210
      %s227 = sphi 0, %s211
    $region4: #{tpu_custom_call.1} parent=1 // loop_header_branch
      %27 = sbr.rel (%p25) target = $region8
    $region5: #{tpu_custom_call.1} parent=1 // loop_body
      %s29 = ssub.s32 %s24, 1
      %s30 = ssub.s32 %s24, 2
      %s31 = sadd.s32 %s24, 1
      %s32 = ssub.s32 %s24, %s31
      %p33 = scmp.eq.s32.totalorder %s32, 0
      %s35 = sadd.s32 %s34, 1
      %s36 = scalar_select %p33, %s34, %s35
      %p39 = pneg %p33
      %p40 = scmp.eq.s32.totalorder %s24, 1
      %p41 = por %p39, %p40
      %p42 = scmp.ne.s32.totalorder %s34, %s37
      %p43 = scmp.eq.s32.totalorder %s24, 0
      %p44 = por %p42, %p43
      %p45 = scmp.ne.s32.totalorder %s34, %s37
      %p46 = scmp.eq.s32.totalorder %s29, 1
      %p47 = por %p45, %p46
      %p48 = scmp.ne.s32.totalorder %s37, %s38
      %p49 = scmp.eq.s32.totalorder %s29, 0
      %p50 = por %p48, %p49
      %p51 = scmp.ne.s32.totalorder %s37, %s38
      %p52 = scmp.eq.s32.totalorder %s30, 1
      %p53 = por %p51, %p52
      %p55 = scmp.ne.s32.totalorder %s38, %s54
      %p56 = scmp.eq.s32.totalorder %s30, 0
      %p57 = por %p55, %p56
      %s59 = sadd.s32 %s58, 1
      %p62 = scmp.eq.s32.totalorder %s24, 1
      %p63 = scmp.ne.s32.totalorder %s58, %s60
      %p64 = scmp.eq.s32.totalorder %s24, 0
      %p65 = por %p63, %p64
      %p66 = scmp.ne.s32.totalorder %s58, %s60
      %p67 = scmp.eq.s32.totalorder %s29, 1
      %p68 = por %p66, %p67
      %p69 = scmp.ne.s32.totalorder %s60, %s61
      %p70 = scmp.eq.s32.totalorder %s29, 0
      %p71 = por %p69, %p70
      %p72 = scmp.ne.s32.totalorder %s60, %s61
      %p73 = scmp.eq.s32.totalorder %s30, 1
      %p74 = por %p72, %p73
      %p76 = scmp.ne.s32.totalorder %s61, %s75
      %p77 = scmp.eq.s32.totalorder %s30, 0
      %p78 = por %p76, %p77
      %s80 = sadd.s32 %s79, 1
      %p83 = scmp.eq.s32.totalorder %s24, 1
      %p84 = scmp.ne.s32.totalorder %s79, %s81
      %p85 = scmp.eq.s32.totalorder %s24, 0
      %p86 = por %p84, %p85
      %p87 = scmp.ne.s32.totalorder %s79, %s81
      %p88 = scmp.eq.s32.totalorder %s29, 1
      %p89 = por %p87, %p88
      %p90 = scmp.ne.s32.totalorder %s81, %s82
      %p91 = scmp.eq.s32.totalorder %s29, 0
      %p92 = por %p90, %p91
      %p93 = scmp.ne.s32.totalorder %s81, %s82
      %p94 = scmp.eq.s32.totalorder %s30, 1
      %p95 = por %p93, %p94
      %p97 = scmp.ne.s32.totalorder %s82, %s96
      %p98 = scmp.eq.s32.totalorder %s30, 0
      %p99 = por %p97, %p98
      %s101 = sadd.s32 %s100, 1
      %p104 = scmp.eq.s32.totalorder %s24, 1
      %p105 = scmp.ne.s32.totalorder %s100, %s102
      %p106 = scmp.eq.s32.totalorder %s24, 0
      %p107 = por %p105, %p106
      %p108 = scmp.ne.s32.totalorder %s100, %s102
      %p109 = scmp.eq.s32.totalorder %s29, 1
      %p110 = por %p108, %p109
      %p111 = scmp.ne.s32.totalorder %s102, %s103
      %p112 = scmp.eq.s32.totalorder %s29, 0
      %p113 = por %p111, %p112
      %p114 = scmp.ne.s32.totalorder %s102, %s103
      %p115 = scmp.eq.s32.totalorder %s30, 1
      %p116 = por %p114, %p115
      %p118 = scmp.ne.s32.totalorder %s103, %s117
      %p119 = scmp.eq.s32.totalorder %s30, 0
      %p120 = por %p118, %p119
      %s122 = sadd.s32 %s121, 1
      %p125 = scmp.eq.s32.totalorder %s24, 1
      %p126 = scmp.ne.s32.totalorder %s121, %s123
      %p127 = scmp.eq.s32.totalorder %s24, 0
      %p128 = por %p126, %p127
      %p129 = scmp.ne.s32.totalorder %s121, %s123
      %p130 = scmp.eq.s32.totalorder %s29, 1
      %p131 = por %p129, %p130
      %p132 = scmp.ne.s32.totalorder %s123, %s124
      %p133 = scmp.eq.s32.totalorder %s29, 0
      %p134 = por %p132, %p133
      %p135 = scmp.ne.s32.totalorder %s123, %s124
      %p136 = scmp.eq.s32.totalorder %s30, 1
      %p137 = por %p135, %p136
      %p139 = scmp.ne.s32.totalorder %s124, %s138
      %p140 = scmp.eq.s32.totalorder %s30, 0
      %p141 = por %p139, %p140
      %s143 = sadd.s32 %s142, 1
      %p146 = scmp.eq.s32.totalorder %s24, 1
      %p147 = scmp.ne.s32.totalorder %s142, %s144
      %p148 = scmp.eq.s32.totalorder %s24, 0
      %p149 = por %p147, %p148
      %p150 = scmp.ne.s32.totalorder %s142, %s144
      %p151 = scmp.eq.s32.totalorder %s29, 1
      %p152 = por %p150, %p151
      %p153 = scmp.ne.s32.totalorder %s144, %s145
      %p154 = scmp.eq.s32.totalorder %s29, 0
      %p155 = por %p153, %p154
      %p156 = scmp.ne.s32.totalorder %s144, %s145
      %p157 = scmp.eq.s32.totalorder %s30, 1
      %p158 = por %p156, %p157
      %p160 = scmp.ne.s32.totalorder %s145, %s159
      %p161 = scmp.eq.s32.totalorder %s30, 0
      %p162 = por %p160, %p161
      %s164 = sadd.s32 %s163, 1
      %p167 = scmp.eq.s32.totalorder %s24, 1
      %p168 = scmp.ne.s32.totalorder %s163, %s165
      %p169 = scmp.eq.s32.totalorder %s24, 0
      %p170 = por %p168, %p169
      %p171 = scmp.ne.s32.totalorder %s163, %s165
      %p172 = scmp.eq.s32.totalorder %s29, 1
      %p173 = por %p171, %p172
      %p174 = scmp.ne.s32.totalorder %s165, %s166
      %p175 = scmp.eq.s32.totalorder %s29, 0
      %p176 = por %p174, %p175
      %p177 = scmp.ne.s32.totalorder %s165, %s166
      %p178 = scmp.eq.s32.totalorder %s30, 1
      %p179 = por %p177, %p178
      %p181 = scmp.ne.s32.totalorder %s166, %s180
      %p182 = scmp.eq.s32.totalorder %s30, 0
      %p183 = por %p181, %p182
      %s185 = sadd.s32 %s184, 1
      %p188 = scmp.eq.s32.totalorder %s24, 1
      %p189 = scmp.ne.s32.totalorder %s184, %s186
      %p190 = scmp.eq.s32.totalorder %s24, 0
      %p191 = por %p189, %p190
      %p192 = scmp.ne.s32.totalorder %s184, %s186
      %p193 = scmp.eq.s32.totalorder %s29, 1
      %p194 = por %p192, %p193
      %p195 = scmp.ne.s32.totalorder %s186, %s187
      %p196 = scmp.eq.s32.totalorder %s29, 0
      %p197 = por %p195, %p196
      %p198 = scmp.ne.s32.totalorder %s186, %s187
      %p199 = scmp.eq.s32.totalorder %s30, 1
      %p200 = por %p198, %p199
      %p202 = scmp.ne.s32.totalorder %s187, %s201
      %p203 = scmp.eq.s32.totalorder %s30, 0
      %p204 = por %p202, %p203
      %s205 = ssub.s32 %s24, %s31
      %p206 = scmp.eq.s32.totalorder %s205, 0
      %s208 = sadd.s32 %s207, 1
      %s209 = scalar_select %p206, %s207, %s208
      %p212 = pneg %p206
      %p213 = scmp.eq.s32.totalorder %s24, 1
      %p214 = por %p212, %p213
      %p215 = scmp.ne.s32.totalorder %s207, %s210
      %p216 = scmp.eq.s32.totalorder %s24, 0
      %p217 = por %p215, %p216
      %p218 = scmp.ne.s32.totalorder %s207, %s210
      %p219 = scmp.eq.s32.totalorder %s29, 1
      %p220 = por %p218, %p219
      %p221 = scmp.ne.s32.totalorder %s210, %s211
      %p222 = scmp.eq.s32.totalorder %s29, 0
      %p223 = por %p221, %p222
      %p224 = scmp.ne.s32.totalorder %s210, %s211
      %p225 = scmp.eq.s32.totalorder %s30, 1
      %p226 = por %p224, %p225
      %p228 = scmp.ne.s32.totalorder %s211, %s227
      %p229 = scmp.eq.s32.totalorder %s30, 0
      %p230 = por %p228, %p229
      %p231 = scmp.le.s32.totalorder 1, %s24
      %p232 = scmp.lt.s32.totalorder %s24, 3
      %p233 = pnand %p231, %p232
      %p234 = pneg %p233
      // Predicated region
      $region9: #{tpu_custom_call.1} parent=5 // pred_check
        _
      $region10: #{tpu_custom_call.1} parent=5 // pred_check_branch
        %236 = sbr.rel (%p233) target = $region12
      $region11: #{tpu_custom_call.1} parent=5 // pred_region
        %s237 = ssub.s32 %s24, 1
        // Predicated region
        $region13: #{tpu_custom_call.1} parent=11 // pred_check
          %p238 = pneg %p71
        $region14: #{tpu_custom_call.1} parent=11 // pred_check_branch
          %240 = sbr.rel (%p238) target = $region16
        $region15: #{tpu_custom_call.1} parent=11 // pred_region
          _
        $region16: #{tpu_custom_call.1} parent=11 // pred_fallthru
          _
        // Predicated region
        $region17: #{tpu_custom_call.1} parent=11 // pred_check
          %p241 = pneg %p92
        $region18: #{tpu_custom_call.1} parent=11 // pred_check_branch
          %243 = sbr.rel (%p241) target = $region20
        $region19: #{tpu_custom_call.1} parent=11 // pred_region
          _
        $region20: #{tpu_custom_call.1} parent=11 // pred_fallthru
          _
        // Predicated region
        $region21: #{tpu_custom_call.1} parent=11 // pred_check
          %p244 = pneg %p113
        $region22: #{tpu_custom_call.1} parent=11 // pred_check_branch
          %246 = sbr.rel (%p244) target = $region24
        $region23: #{tpu_custom_call.1} parent=11 // pred_region
          _
        $region24: #{tpu_custom_call.1} parent=11 // pred_fallthru
          _
        // Predicated region
        $region25: #{tpu_custom_call.1} parent=11 // pred_check
          %p247 = pneg %p134
        $region26: #{tpu_custom_call.1} parent=11 // pred_check_branch
          %249 = sbr.rel (%p247) target = $region28
        $region27: #{tpu_custom_call.1} parent=11 // pred_region
          _
        $region28: #{tpu_custom_call.1} parent=11 // pred_fallthru
          _
        // Predicated region
        $region29: #{tpu_custom_call.1} parent=11 // pred_check
          %p250 = pneg %p155
        $region30: #{tpu_custom_call.1} parent=11 // pred_check_branch
          %252 = sbr.rel (%p250) target = $region32
        $region31: #{tpu_custom_call.1} parent=11 // pred_region
          _
        $region32: #{tpu_custom_call.1} parent=11 // pred_fallthru
          _
        // Predicated region
        $region33: #{tpu_custom_call.1} parent=11 // pred_check
          %p253 = pneg %p176
        $region34: #{tpu_custom_call.1} parent=11 // pred_check_branch
          %255 = sbr.rel (%p253) target = $region36
        $region35: #{tpu_custom_call.1} parent=11 // pred_region
          _
        $region36: #{tpu_custom_call.1} parent=11 // pred_fallthru
          _
        // Predicated region
        $region37: #{tpu_custom_call.1} parent=11 // pred_check
          %p256 = pneg %p197
        $region38: #{tpu_custom_call.1} parent=11 // pred_check_branch
          %258 = sbr.rel (%p256) target = $region40
        $region39: #{tpu_custom_call.1} parent=11 // pred_region
          _
        $region40: #{tpu_custom_call.1} parent=11 // pred_fallthru
          _
      $region12: #{tpu_custom_call.1} parent=5 // pred_fallthru
        _
      %p259 = scmp.lt.s32.totalorder %s24, 2
      // Predicated region
      $region41: #{tpu_custom_call.1} parent=5 // pred_check
        %p260 = pneg %p259
      $region42: #{tpu_custom_call.1} parent=5 // pred_check_branch
        %262 = sbr.rel (%p260) target = $region44
      $region43: #{tpu_custom_call.1} parent=5 // pred_region
        // Predicated region
        $region45: #{tpu_custom_call.1} parent=43 // pred_check
          %p263 = pneg %p44
        $region46: #{tpu_custom_call.1} parent=43 // pred_check_branch
          %265 = sbr.rel (%p263) target = $region48
        $region47: #{tpu_custom_call.1} parent=43 // pred_region
          %p266 = scmp.lt.s32.totalorder %s24, 1
          %s267 = scalar_select %p266, %s24, 1
          %s268 = smul.addr %s267, 2
          %s269 = smul.addr %s268, 8
          %s270 = scalar_lea.vmem %s1, %s269
        $region48: #{tpu_custom_call.1} parent=43 // pred_fallthru
          _
      $region44: #{tpu_custom_call.1} parent=5 // pred_fallthru
        _
      %p271 = scmp.le.s32.totalorder 1, %s24
      %p272 = scmp.lt.s32.totalorder %s24, 3
      %p273 = pnand %p271, %p272
      %p274 = pneg %p273
      // Predicated region
      $region49: #{tpu_custom_call.1} parent=5 // pred_check
        _
      $region50: #{tpu_custom_call.1} parent=5 // pred_check_branch
        %276 = sbr.rel (%p273) target = $region52
      $region51: #{tpu_custom_call.1} parent=5 // pred_region
        %s277 = ssub.s32 %s24, 1
        %p278 = scmp.lt.s32.totalorder %s29, 1
        %s279 = scalar_select %p278, %s29, 1
        %s280 = smul.addr %s279, 2
        %s281 = smul.addr %s280, 8
        %s282 = scalar_lea.vmem %s1, %s281
        %p283 = pneg %p50
        %p284 = pneg %p47
        %p285 = pneg %p71
        %p286 = pneg %p68
        %p287 = pneg %p92
        %p288 = pneg %p89
        %p289 = pneg %p113
        %p290 = pneg %p110
        %p291 = pneg %p134
        %p292 = pneg %p131
        %p293 = pneg %p155
        %p294 = pneg %p152
        %p295 = pneg %p176
        %p296 = pneg %p173
        %p297 = pneg %p197
        %p298 = pneg %p194
        %p299 = pneg %p223
        %p300 = pneg %p220
        %s301 = sand.u32 %s210, 1
        %s302 = scalar_lea.sflag [#allocation5], %s301
        %s303 = sand.u32 %s210, 1
        %s304 = smul.addr %s303, 16
        %s305 = scalar_lea.vmem [#allocation4], %s304
        %p306 = scmp.lt.s32.totalorder %s29, 1
        %s307 = scalar_select %p306, %s29, 1
        %s308 = smul.addr %s307, 2
        %s309 = smul.addr %s308, 8
        %s310 = scalar_lea.vmem %s1, %s309
        %s312 = sld [smem:[#allocation3 + %s29]]
        %v313 = vlaneseq
        %v314 = vshrl.u32 %v313, 7
        %v315 = vadd.s32 %v314, 8
        %v316 = vstv %s312
        %vm317 = vcmp.lt.s32.totalorder %v314, %v316
        %vm318 = vcmp.lt.s32.totalorder %v315, %v316
        %v319 = vsel %vm317, 1, 0
        %v320 = vsel %vm318, 1, 0
        %v321 = vcvt.s32.f32 %v319
        %v322 = vcvt.s32.f32 %v320
        %v323 = vlaneseq
        %v324 = vand.u32 %v323, 127
        %vm325 = vcmp.lt.s32.totalorder %v324, %v316
        %v326 = vsel %vm325, 0.0, -1e+30
        %v327 = vld [vmem:[%s310] sm:$0xff]
        %v328 = vld [vmem:[%s310 + $0x8] sm:$0xff]
        %v329 = vpack.c.bf16 %v328, %v327
        %v330 = vld [vmem:[%s8] sm:$0x1]
        %v331 = vld [vmem:[%s8 + $0x1] sm:$0x1]
        %v332 = vld [vmem:[%s8 + $0x2] sm:$0x1]
        %v333 = vld [vmem:[%s8 + $0x3] sm:$0x1]
        %v334 = vld [vmem:[%s8 + $0x4] sm:$0x1]
        %v335 = vld [vmem:[%s8 + $0x5] sm:$0x1]
        %v336 = vld [vmem:[%s2] sm:$0xf]
        %v337 = vld [vmem:[%s2 + $0x4] sm:$0xf]
        %v338 = vld [vmem:[%s2 + $0x8] sm:$0xf]
        %v339 = vld [vmem:[%s2 + $0xc] sm:$0xf]
        %v340 = vld [vmem:[%s3] sm:$0x1]
        %v342 = vlaneseq
        %v343 = vshrl.u32 %v342, 7
        %v344 = vsub.s32 0, %v343
        %v345 = vrot.slane %v340, %v344
        %v351 = vunpack.c.l.b16 %v336
        %v352 = vunpack.c.l.b16 %v337
        %v353 = vunpack.c.l.b16 %v338
        %v354 = vunpack.c.l.b16 %v339
        %v355 = vpack.c.b16 %v352, %v351
        %v356 = vpack.c.b16 %v354, %v353
        %vm359 = vcmask 261120
        %v361 = vsel %vm359, %v329, 0
        %363 = vmatprep.subr.bf16.mxu0 0
        %364 = vmatpush1.bf16.msra.mxu0 0
        %365 = vmatprep.subr.bf16.mxu0 0
        %366 = vmatpush1.bf16.msra.mxu0 0
        %367 = vmatprep.subr.bf16.mxu0 0
        %368 = vmatpush1.bf16.msra.mxu0 0
        %369 = vmatprep.subr.bf16.mxu0 0
        %370 = vmatpush1.bf16.msra.mxu0 0
        %371 = vmatprep.subr.bf16.mxu0 0
        %372 = vmatpush1.bf16.msra.mxu0 0
        %373 = vmatprep.subr.bf16.mxu0 0
        %374 = vmatpush1.bf16.msra.mxu0 0
        %375 = vmatprep.subr.bf16.mxu0 0
        %376 = vmatpush1.bf16.msra.mxu0 %v356
        %377 = vmatprep.subr.bf16.mxu0 0
        %378 = vmatpush1.bf16.msra.mxu0 %v355
        %379 = vmatprep.subr.bf16.mxu0 0
        %380 = vmatpush2.bf16.msra.mxu0 0
        %381 = vmatprep.subr.bf16.mxu0 0
        %382 = vmatpush2.bf16.msra.mxu0 0
        %383 = vmatprep.subr.bf16.mxu0 0
        %384 = vmatpush2.bf16.msra.mxu0 0
        %385 = vmatprep.subr.bf16.mxu0 0
        %386 = vmatpush2.bf16.msra.mxu0 0
        %387 = vmatprep.subr.bf16.mxu0 0
        %388 = vmatpush2.bf16.msra.mxu0 0
        %389 = vmatprep.subr.bf16.mxu0 0
        %390 = vmatpush2.bf16.msra.mxu0 0
        %391 = vmatprep.subr.bf16.mxu0 0
        %392 = vmatpush2.bf16.msra.mxu0 0
        %393 = vmatprep.subr.bf16.mxu0 0
        %394 = vmatpush2.bf16.msra.mxu0 0
        %395 = vmatprep.mubr.bf16.mxu0 0
        %396 = vmatmul.mubr.bf16.gmra.mxu0 %v361
        %v397 = vpop.f32.mrf.mxu0
        %v398 = vadd.f32 %v345, %v397
        %v399 = vpop.f32.mrf.mxu0
        %v400 = vpop.f32.mrf.mxu0
        %v401 = vadd.f32 %v345, %v400
        %v402 = vpop.f32.mrf.mxu0
        %403 = vdwg.mxu0
        %v404 = vpack.c.bf16 %v401, %v398
        %406 = vrot.lane.b32.xlu0 %v404, 96
        %v407 = vpop.permute.xlu0 %406
        %vm408 = vcmask 130048
        %v410 = vsel %vm408, %v404, 0
        %v413 = vsel %vm408, %v407, 0
        %415 = vmatprep.subr.bf16.mxu0 0
        %416 = vmatpush1.bf16.xpose.msra.mxu0 0
        %417 = vmatprep.subr.bf16.mxu0 0
        %418 = vmatpush1.bf16.xpose.msra.mxu0 0
        %419 = vmatprep.subr.bf16.mxu0 0
        %420 = vmatpush1.bf16.xpose.msra.mxu0 0
        %421 = vmatprep.subr.bf16.mxu0 0
        %422 = vmatpush1.bf16.xpose.msra.mxu0 0
        %423 = vmatprep.subr.bf16.mxu0 0
        %424 = vmatpush1.bf16.xpose.msra.mxu0 0
        %425 = vmatprep.subr.bf16.mxu0 0
        %426 = vmatpush1.bf16.xpose.msra.mxu0 0
        %427 = vmatprep.subr.bf16.mxu0 0
        %428 = vmatpush1.bf16.xpose.msra.mxu0 0
        %429 = vmatprep.subr.bf16.mxu0 0
        %430 = vmatpush1.bf16.xpose.msra.mxu0 %v413
        %431 = vmatprep.subr.bf16.mxu0 0
        %432 = vmatpush2.bf16.xpose.msra.mxu0 0
        %433 = vmatprep.subr.bf16.mxu0 0
        %434 = vmatpush2.bf16.xpose.msra.mxu0 0
        %435 = vmatprep.subr.bf16.mxu0 0
        %436 = vmatpush2.bf16.xpose.msra.mxu0 0
        %437 = vmatprep.subr.bf16.mxu0 0
        %438 = vmatpush2.bf16.xpose.msra.mxu0 0
        %439 = vmatprep.subr.bf16.mxu0 0
        %440 = vmatpush2.bf16.xpose.msra.mxu0 0
        %441 = vmatprep.subr.bf16.mxu0 0
        %442 = vmatpush2.bf16.xpose.msra.mxu0 0
        %443 = vmatprep.subr.bf16.mxu0 0
        %444 = vmatpush2.bf16.xpose.msra.mxu0 0
        %445 = vmatprep.subr.bf16.mxu0 0
        %446 = vmatpush2.bf16.xpose.msra.mxu0 0
        %447 = vmatprep.mubr.bf16.mxu0 0
        %448 = vmatmul.mubr.bf16.gmra.mxu0 %v410
        %v449 = vpop.f32.mrf.mxu0
        %v450 = vadd.f32 %v326, %v449
        %v451 = vpop.f32.mrf.mxu0
        %v452 = vpop.f32.mrf.mxu0
        %v453 = vadd.f32 %v326, %v452
        %v454 = vpop.f32.mrf.mxu0
        %455 = vdwg.mxu0
        %v456 = vsel %vm408, %v450, -inf
        %457 = vmax.xlane.f32.xlu0 %v456
        %v458 = vpop.xlane.xlu0 %457
        %v459 = vsel %vm408, %v453, -inf
        %460 = vmax.xlane.f32.xlu0 %v459
        %v461 = vpop.xlane.xlu0 %460
        %v462 = vsub.f32 %v450, %v458
        %v463 = vsub.f32 %v453, %v461
        %v464 = vmul.f32 %v462, 1.442695
        %v465 = vpow.pop %v464
        %v466 = vmul.f32 %v463, 1.442695
        %v467 = vpow.pop %v466
        %v468 = vsel %vm408, %v465, 0.0
        %469 = vadd.xlane.f32.xlu0 %v468
        %v470 = vpop.xlane.xlu0 %469
        %v471 = vsel %vm408, %v467, 0.0
        %472 = vadd.xlane.f32.xlu0 %v471
        %v473 = vpop.xlane.xlu0 %472
        %v474 = vrcp.pop %v470
        %v475 = vrcp.pop %v473
        %v476 = vmul.f32 %v465, %v474
        %v477 = vmul.f32 %v467, %v475
        %v478 = vpack.c.bf16 %v477, %v476
        %479 = vrot.lane.b32.xlu0 %v404, 64
        %v480 = vpop.permute.xlu0 %479
        %v483 = vsel %vm408, %v478, 0
        %485 = vmatprep.subr.bf16.mxu0 0
        %486 = vmatpush1.bf16.msra.mxu0 0
        %487 = vmatprep.subr.bf16.mxu0 0
        %488 = vmatpush1.bf16.msra.mxu0 0
        %489 = vmatprep.subr.bf16.mxu0 0
        %490 = vmatpush1.bf16.msra.mxu0 0
        %491 = vmatprep.subr.bf16.mxu0 0
        %492 = vmatpush1.bf16.msra.mxu0 0
        %493 = vmatprep.subr.bf16.mxu0 0
        %494 = vmatpush1.bf16.msra.mxu0 0
        %495 = vmatprep.subr.bf16.mxu0 0
        %496 = vmatpush1.bf16.msra.mxu0 0
        %497 = vmatprep.subr.bf16.mxu0 0
        %498 = vmatpush1.bf16.msra.mxu0 0
        %499 = vmatprep.subr.bf16.mxu0 0
        %500 = vmatpush1.bf16.msra.mxu0 %v480
        %501 = vmatprep.subr.bf16.mxu0 0
        %502 = vmatpush2.bf16.msra.mxu0 0
        %503 = vmatprep.subr.bf16.mxu0 0
        %504 = vmatpush2.bf16.msra.mxu0 0
        %505 = vmatprep.subr.bf16.mxu0 0
        %506 = vmatpush2.bf16.msra.mxu0 0
        %507 = vmatprep.subr.bf16.mxu0 0
        %508 = vmatpush2.bf16.msra.mxu0 0
        %509 = vmatprep.subr.bf16.mxu0 0
        %510 = vmatpush2.bf16.msra.mxu0 0
        %511 = vmatprep.subr.bf16.mxu0 0
        %512 = vmatpush2.bf16.msra.mxu0 0
        %513 = vmatprep.subr.bf16.mxu0 0
        %514 = vmatpush2.bf16.msra.mxu0 0
        %515 = vmatprep.subr.bf16.mxu0 0
        %516 = vmatpush2.bf16.msra.mxu0 0
        %517 = vmatprep.mubr.bf16.mxu0 0
        %518 = vmatmul.mubr.bf16.gmra.mxu0 %v483
        %v519 = vpop.f32.mrf.mxu0
        %v520 = vadd.f32 0.0, %v519
        %v521 = vpop.f32.mrf.mxu0
        %v522 = vpop.f32.mrf.mxu0
        %v523 = vadd.f32 0.0, %v522
        %v524 = vpop.f32.mrf.mxu0
        %525 = vdwg.mxu0
        %526 = vrot.lane.b32.xlu0 %v404, 112
        %v527 = vpop.permute.xlu0 %526
        %528 = vrot.lane.b32.xlu0 %v404, 80
        %v529 = vpop.permute.xlu0 %528
        %v531 = vsel %vm408, %v527, 0
        %v534 = vsel %vm408, %v529, 0
        %536 = vmatprep.subr.bf16.mxu0 0
        %537 = vmatpush1.bf16.xpose.msra.mxu0 0
        %538 = vmatprep.subr.bf16.mxu0 0
        %539 = vmatpush1.bf16.xpose.msra.mxu0 0
        %540 = vmatprep.subr.bf16.mxu0 0
        %541 = vmatpush1.bf16.xpose.msra.mxu0 0
        %542 = vmatprep.subr.bf16.mxu0 0
        %543 = vmatpush1.bf16.xpose.msra.mxu0 0
        %544 = vmatprep.subr.bf16.mxu0 0
        %545 = vmatpush1.bf16.xpose.msra.mxu0 0
        %546 = vmatprep.subr.bf16.mxu0 0
        %547 = vmatpush1.bf16.xpose.msra.mxu0 0
        %548 = vmatprep.subr.bf16.mxu0 0
        %549 = vmatpush1.bf16.xpose.msra.mxu0 0
        %550 = vmatprep.subr.bf16.mxu0 0
        %551 = vmatpush1.bf16.xpose.msra.mxu0 %v534
        %552 = vmatprep.subr.bf16.mxu0 0
        %553 = vmatpush2.bf16.xpose.msra.mxu0 0
        %554 = vmatprep.subr.bf16.mxu0 0
        %555 = vmatpush2.bf16.xpose.msra.mxu0 0
        %556 = vmatprep.subr.bf16.mxu0 0
        %557 = vmatpush2.bf16.xpose.msra.mxu0 0
        %558 = vmatprep.subr.bf16.mxu0 0
        %559 = vmatpush2.bf16.xpose.msra.mxu0 0
        %560 = vmatprep.subr.bf16.mxu0 0
        %561 = vmatpush2.bf16.xpose.msra.mxu0 0
        %562 = vmatprep.subr.bf16.mxu0 0
        %563 = vmatpush2.bf16.xpose.msra.mxu0 0
        %564 = vmatprep.subr.bf16.mxu0 0
        %565 = vmatpush2.bf16.xpose.msra.mxu0 0
        %566 = vmatprep.subr.bf16.mxu0 0
        %567 = vmatpush2.bf16.xpose.msra.mxu0 0
        %568 = vmatprep.mubr.bf16.mxu0 0
        %569 = vmatmul.mubr.bf16.gmra.mxu0 %v531
        %v570 = vpop.f32.mrf.mxu0
        %v571 = vadd.f32 %v326, %v570
        %v572 = vpop.f32.mrf.mxu0
        %v573 = vpop.f32.mrf.mxu0
        %v574 = vadd.f32 %v326, %v573
        %v575 = vpop.f32.mrf.mxu0
        %576 = vdwg.mxu0
        %v577 = vsel %vm408, %v571, -inf
        %578 = vmax.xlane.f32.xlu0 %v577
        %v579 = vpop.xlane.xlu0 %578
        %v580 = vsel %vm408, %v574, -inf
        %581 = vmax.xlane.f32.xlu0 %v580
        %v582 = vpop.xlane.xlu0 %581
        %v583 = vsub.f32 %v571, %v579
        %v584 = vsub.f32 %v574, %v582
        %v585 = vmul.f32 %v583, 1.442695
        %v586 = vpow.pop %v585
        %v587 = vmul.f32 %v584, 1.442695
        %v588 = vpow.pop %v587
        %v589 = vsel %vm408, %v586, 0.0
        %590 = vadd.xlane.f32.xlu0 %v589
        %v591 = vpop.xlane.xlu0 %590
        %v592 = vsel %vm408, %v588, 0.0
        %593 = vadd.xlane.f32.xlu0 %v592
        %v594 = vpop.xlane.xlu0 %593
        %v595 = vrcp.pop %v591
        %v596 = vrcp.pop %v594
        %v597 = vmul.f32 %v586, %v595
        %v598 = vmul.f32 %v588, %v596
        %v599 = vpack.c.bf16 %v598, %v597
        %600 = vrot.lane.b32.xlu0 %v404, 48
        %v601 = vpop.permute.xlu0 %600
        %v604 = vsel %vm408, %v599, 0
        %606 = vmatprep.subr.bf16.mxu0 0
        %607 = vmatpush1.bf16.msra.mxu0 0
        %608 = vmatprep.subr.bf16.mxu0 0
        %609 = vmatpush1.bf16.msra.mxu0 0
        %610 = vmatprep.subr.bf16.mxu0 0
        %611 = vmatpush1.bf16.msra.mxu0 0
        %612 = vmatprep.subr.bf16.mxu0 0
        %613 = vmatpush1.bf16.msra.mxu0 0
        %614 = vmatprep.subr.bf16.mxu0 0
        %615 = vmatpush1.bf16.msra.mxu0 0
        %616 = vmatprep.subr.bf16.mxu0 0
        %617 = vmatpush1.bf16.msra.mxu0 0
        %618 = vmatprep.subr.bf16.mxu0 0
        %619 = vmatpush1.bf16.msra.mxu0 0
        %620 = vmatprep.subr.bf16.mxu0 0
        %621 = vmatpush1.bf16.msra.mxu0 %v601
        %622 = vmatprep.subr.bf16.mxu0 0
        %623 = vmatpush2.bf16.msra.mxu0 0
        %624 = vmatprep.subr.bf16.mxu0 0
        %625 = vmatpush2.bf16.msra.mxu0 0
        %626 = vmatprep.subr.bf16.mxu0 0
        %627 = vmatpush2.bf16.msra.mxu0 0
        %628 = vmatprep.subr.bf16.mxu0 0
        %629 = vmatpush2.bf16.msra.mxu0 0
        %630 = vmatprep.subr.bf16.mxu0 0
        %631 = vmatpush2.bf16.msra.mxu0 0
        %632 = vmatprep.subr.bf16.mxu0 0
        %633 = vmatpush2.bf16.msra.mxu0 0
        %634 = vmatprep.subr.bf16.mxu0 0
        %635 = vmatpush2.bf16.msra.mxu0 0
        %636 = vmatprep.subr.bf16.mxu0 0
        %637 = vmatpush2.bf16.msra.mxu0 0
        %638 = vmatprep.mubr.bf16.mxu0 0
        %639 = vmatmul.mubr.bf16.gmra.mxu0 %v604
        %v640 = vpop.f32.mrf.mxu0
        %v641 = vadd.f32 0.0, %v640
        %v642 = vpop.f32.mrf.mxu0
        %v643 = vpop.f32.mrf.mxu0
        %v644 = vadd.f32 0.0, %v643
        %v645 = vpop.f32.mrf.mxu0
        %646 = vdwg.mxu0
        %649 = vrot.lane.b32.xlu0 %v641, 16
        %v650 = vpop.permute.xlu0 %649
        %651 = vrot.lane.b32.xlu0 %v644, 16
        %v652 = vpop.permute.xlu0 %651
        %v655 = vsel %vm408, %v520, %v650
        %v656 = vsel %vm408, %v523, %v652
        %v657 = vpack.c.bf16 %v656, %v655
        %v658 = vld [vmem:[%s4] sm:$0xf]
        %v659 = vld [vmem:[%s4 + $0x4] sm:$0xf]
        %v660 = vld [vmem:[%s4 + $0x8] sm:$0xf]
        %v661 = vld [vmem:[%s4 + $0xc] sm:$0xf]
        %v662 = vlaneseq
        %v663 = vshrl.u32 %v662, 7
        %v664 = vsub.s32 0, %v663
        %v665 = vrot.slane %v330, %v664
        %v670 = vunpack.c.l.b16 %v658
        %v671 = vunpack.c.l.b16 %v659
        %v672 = vunpack.c.l.b16 %v660
        %v673 = vunpack.c.l.b16 %v661
        %v674 = vpack.c.b16 %v671, %v670
        %v675 = vpack.c.b16 %v673, %v672
        %v679 = vsel %vm359, %v657, 0
        %681 = vmatprep.subr.bf16.mxu0 0
        %682 = vmatpush1.bf16.msra.mxu0 0
        %683 = vmatprep.subr.bf16.mxu0 0
        %684 = vmatpush1.bf16.msra.mxu0 0
        %685 = vmatprep.subr.bf16.mxu0 0
        %686 = vmatpush1.bf16.msra.mxu0 0
        %687 = vmatprep.subr.bf16.mxu0 0
        %688 = vmatpush1.bf16.msra.mxu0 0
        %689 = vmatprep.subr.bf16.mxu0 0
        %690 = vmatpush1.bf16.msra.mxu0 0
        %691 = vmatprep.subr.bf16.mxu0 0
        %692 = vmatpush1.bf16.msra.mxu0 0
        %693 = vmatprep.subr.bf16.mxu0 0
        %694 = vmatpush1.bf16.msra.mxu0 %v675
        %695 = vmatprep.subr.bf16.mxu0 0
        %696 = vmatpush1.bf16.msra.mxu0 %v674
        %697 = vmatprep.subr.bf16.mxu0 0
        %698 = vmatpush2.bf16.msra.mxu0 0
        %699 = vmatprep.subr.bf16.mxu0 0
        %700 = vmatpush2.bf16.msra.mxu0 0
        %701 = vmatprep.subr.bf16.mxu0 0
        %702 = vmatpush2.bf16.msra.mxu0 0
        %703 = vmatprep.subr.bf16.mxu0 0
        %704 = vmatpush2.bf16.msra.mxu0 0
        %705 = vmatprep.subr.bf16.mxu0 0
        %706 = vmatpush2.bf16.msra.mxu0 0
        %707 = vmatprep.subr.bf16.mxu0 0
        %708 = vmatpush2.bf16.msra.mxu0 0
        %709 = vmatprep.subr.bf16.mxu0 0
        %710 = vmatpush2.bf16.msra.mxu0 0
        %711 = vmatprep.subr.bf16.mxu0 0
        %712 = vmatpush2.bf16.msra.mxu0 0
        %713 = vmatprep.mubr.bf16.mxu0 0
        %714 = vmatmul.mubr.bf16.gmra.mxu0 %v679
        %v715 = vpop.f32.mrf.mxu0
        %v716 = vadd.f32 %v665, %v715
        %v717 = vpop.f32.mrf.mxu0
        %v718 = vpop.f32.mrf.mxu0
        %v719 = vadd.f32 %v665, %v718
        %v720 = vpop.f32.mrf.mxu0
        %721 = vdwg.mxu0
        %v722 = vadd.f32 %v716, %v327
        %v723 = vadd.f32 %v719, %v328
        %v724 = vmul.f32 %v722, %v321
        %v725 = vmul.f32 %v723, %v322
        %v726 = vlaneseq
        %v727 = vshrl.u32 %v726, 7
        %v728 = vsub.s32 0, %v727
        %v729 = vrot.slane %v331, %v728
        %v730 = vmul.f32 %v724, %v729
        %v731 = vmul.f32 %v725, %v729
        %v732 = vlaneseq
        %v733 = vshrl.u32 %v732, 7
        %v734 = vsub.s32 0, %v733
        %v735 = vrot.slane %v332, %v734
        %v736 = vadd.f32 %v730, %v735
        %v737 = vadd.f32 %v731, %v735
        %v738 = vmul.f32 %v736, %v321
        %v739 = vmul.f32 %v737, %v322
        %v740 = vpack.c.bf16 %v739, %v738
        %v742 = vshrl.u32 %v740, 16
        %v744 = vrot.slane %v742, 7
        %v745 = vshll.u32 %v740, 16
        %v747 = vor.u32 %v744, %v745
        %vm749 = vcmask 1040384
        %vm750 = vsmask.f32 256
        %vm751 = vmand %vm749, %vm750
        %v752 = vsel %vm751, 0, %v747
        %v753 = vrot.slane %v745, 1
        %v754 = vor.u32 %v742, %v753
        %vm756 = vcmask 1047552
        %vm757 = vsmask.f32 7424
        %vm758 = vmand %vm756, %vm757
        %v759 = vsel %vm758, %v754, 0
        %761 = vrot.lane.b32.xlu0 %v740, 32
        %v762 = vpop.permute.xlu0 %761
        %764 = vrot.lane.b32.xlu0 %v759, 64
        %v765 = vpop.permute.xlu0 %764
        %v768 = vsel %vm359, %v752, %v762
        %vm769 = vcmask 523264
        %v771 = vsel %vm769, %v768, %v765
        %v772 = vld [vmem:[%s5] sm:$0xf]
        %v773 = vld [vmem:[%s5 + $0x4] sm:$0xf]
        %v774 = vld [vmem:[%s5 + $0x8] sm:$0xf]
        %v775 = vld [vmem:[%s5 + $0xc] sm:$0xf]
        %v776 = vld [vmem:[%s5 + $0x10] sm:$0xf]
        %v777 = vld [vmem:[%s5 + $0x14] sm:$0xf]
        %v778 = vld [vmem:[%s5 + $0x18] sm:$0xf]
        %v779 = vld [vmem:[%s5 + $0x1c] sm:$0xf]
        %v780 = vld [vmem:[%s5 + $0x20] sm:$0xf]
        %v781 = vld [vmem:[%s5 + $0x24] sm:$0xf]
        %v782 = vld [vmem:[%s5 + $0x28] sm:$0xf]
        %v783 = vld [vmem:[%s5 + $0x2c] sm:$0xf]
        %v784 = vld [vmem:[%s6] sm:$0x1]
        %v786 = vlaneseq
        %v787 = vshrl.u32 %v786, 7
        %v788 = vsub.s32 0, %v787
        %v789 = vrot.slane %v784, %v788
        %v803 = vunpack.c.l.b16 %v772
        %v804 = vunpack.c.l.b16 %v773
        %v805 = vunpack.c.l.b16 %v774
        %v806 = vunpack.c.l.b16 %v775
        %v807 = vunpack.c.l.b16 %v776
        %v808 = vunpack.c.l.b16 %v777
        %v809 = vunpack.c.l.b16 %v778
        %v810 = vunpack.c.l.b16 %v779
        %v811 = vunpack.c.l.b16 %v780
        %v812 = vunpack.c.l.b16 %v781
        %v813 = vunpack.c.l.b16 %v782
        %v814 = vunpack.c.l.b16 %v783
        %v815 = vpack.c.b16 %v804, %v803
        %v816 = vpack.c.b16 %v806, %v805
        %v817 = vpack.c.b16 %v808, %v807
        %v818 = vpack.c.b16 %v810, %v809
        %v819 = vpack.c.b16 %v812, %v811
        %v820 = vpack.c.b16 %v814, %v813
        %vm827 = vcmask 785408
        %v828 = vsel %vm827, %v771, 0
        %830 = vmatprep.subr.bf16.mxu0 0
        %831 = vmatpush1.bf16.msra.mxu0 0
        %832 = vmatprep.subr.bf16.mxu0 0
        %833 = vmatpush1.bf16.msra.mxu0 0
        %834 = vmatprep.subr.bf16.mxu0 0
        %835 = vmatpush1.bf16.msra.mxu0 %v820
        %836 = vmatprep.subr.bf16.mxu0 0
        %837 = vmatpush1.bf16.msra.mxu0 %v819
        %838 = vmatprep.subr.bf16.mxu0 0
        %839 = vmatpush1.bf16.msra.mxu0 %v818
        %840 = vmatprep.subr.bf16.mxu0 0
        %841 = vmatpush1.bf16.msra.mxu0 %v817
        %842 = vmatprep.subr.bf16.mxu0 0
        %843 = vmatpush1.bf16.msra.mxu0 %v816
        %844 = vmatprep.subr.bf16.mxu0 0
        %845 = vmatpush1.bf16.msra.mxu0 %v815
        %846 = vmatprep.subr.bf16.mxu0 0
        %847 = vmatpush2.bf16.msra.mxu0 0
        %848 = vmatprep.subr.bf16.mxu0 0
        %849 = vmatpush2.bf16.msra.mxu0 0
        %850 = vmatprep.subr.bf16.mxu0 0
        %851 = vmatpush2.bf16.msra.mxu0 0
        %852 = vmatprep.subr.bf16.mxu0 0
        %853 = vmatpush2.bf16.msra.mxu0 0
        %854 = vmatprep.subr.bf16.mxu0 0
        %855 = vmatpush2.bf16.msra.mxu0 0
        %856 = vmatprep.subr.bf16.mxu0 0
        %857 = vmatpush2.bf16.msra.mxu0 0
        %858 = vmatprep.subr.bf16.mxu0 0
        %859 = vmatpush2.bf16.msra.mxu0 0
        %860 = vmatprep.subr.bf16.mxu0 0
        %861 = vmatpush2.bf16.msra.mxu0 0
        %862 = vmatprep.mubr.bf16.mxu0 0
        %863 = vmatmul.mubr.bf16.gmra.mxu0 %v828
        %v864 = vpop.f32.mrf.mxu0
        %v865 = vadd.f32 %v789, %v864
        %v866 = vpop.f32.mrf.mxu0
        %v867 = vpop.f32.mrf.mxu0
        %v868 = vadd.f32 %v789, %v867
        %v869 = vpop.f32.mrf.mxu0
        %870 = vdwg.mxu0
        %vm871 = vcmp.gt.f32.partialorder %v865, 20.0
        %vm872 = vcmp.gt.f32.partialorder %v868, 20.0
        %v873 = vmin.f32 %v865, 20.0
        %v874 = vmin.f32 %v868, 20.0
        %v875 = vmul.f32 %v873, 1.442695
        %v876 = vpow.pop %v875
        %v877 = vmul.f32 %v874, 1.442695
        %v878 = vpow.pop %v877
        %v879 = vadd.f32 %v876, 1.0
        %v880 = vlog2.pop %v879
        %v881 = vmul.f32 %v880, 0.6931472
        %v882 = vmul.f32 -0.5, %v876
        %v883 = vadd.f32 %v882, 1.0
        %v884 = vmul.f32 %v883, %v876
        %v885 = vand.u32 2147483647, %v876
        %vm886 = vcmp.lt.f32.partialorder %v885, 0.0004427343
        %v887 = vsel %vm886, %v884, %v881
        %v888 = vadd.f32 %v878, 1.0
        %v889 = vlog2.pop %v888
        %v890 = vmul.f32 %v889, 0.6931472
        %v891 = vmul.f32 -0.5, %v878
        %v892 = vadd.f32 %v891, 1.0
        %v893 = vmul.f32 %v892, %v878
        %v894 = vand.u32 2147483647, %v878
        %vm895 = vcmp.lt.f32.partialorder %v894, 0.0004427343
        %v896 = vsel %vm895, %v893, %v890
        %v897 = vsel %vm871, %v865, %v887
        %v898 = vsel %vm872, %v868, %v896
        %v899 = vtanh.pop %v897
        %v900 = vtanh.pop %v898
        %v901 = vmul.f32 %v865, %v899
        %v902 = vmul.f32 %v868, %v900
        %v903 = vmul.f32 %v901, %v321
        %v904 = vmul.f32 %v902, %v322
        %v905 = vpack.c.bf16 %v904, %v903
        %v906 = vlaneseq
        %v907 = vshrl.u32 %v906, 7
        %v908 = vsub.s32 0, %v907
        %v909 = vrot.slane %v333, %v908
        %v910 = vadd.f32 %v909, 0.0
        %v912 = vshrl.u32 %v905, 16
        %v914 = vrot.slane %v912, 7
        %v915 = vshll.u32 %v905, 16
        %v917 = vor.u32 %v914, %v915
        %v919 = vsel %vm751, 0, %v917
        %v920 = vld [vmem:[%s7] sm:$0xf]
        %v921 = vld [vmem:[%s7 + $0x4] sm:$0xf]
        %v922 = vld [vmem:[%s7 + $0x8] sm:$0xf]
        %v923 = vld [vmem:[%s7 + $0xc] sm:$0xf]
        %v924 = vld [vmem:[%s7 + $0x10] sm:$0xf]
        %v925 = vld [vmem:[%s7 + $0x14] sm:$0xf]
        %v926 = vld [vmem:[%s7 + $0x18] sm:$0xf]
        %v927 = vld [vmem:[%s7 + $0x1c] sm:$0xf]
        %v928 = vld [vmem:[%s7 + $0x20] sm:$0xf]
        %v929 = vld [vmem:[%s7 + $0x24] sm:$0xf]
        %v930 = vld [vmem:[%s7 + $0x28] sm:$0xf]
        %v931 = vld [vmem:[%s7 + $0x2c] sm:$0xf]
        %v932 = vld [vmem:[%s7 + $0x30] sm:$0xf]
        %v933 = vld [vmem:[%s7 + $0x34] sm:$0xf]
        %v934 = vld [vmem:[%s7 + $0x38] sm:$0xf]
        %v935 = vld [vmem:[%s7 + $0x3c] sm:$0xf]
        %v952 = vunpack.c.l.b16 %v920
        %v953 = vunpack.c.l.b16 %v921
        %v954 = vunpack.c.l.b16 %v922
        %v955 = vunpack.c.l.b16 %v923
        %v956 = vunpack.c.l.b16 %v924
        %v957 = vunpack.c.l.b16 %v925
        %v958 = vunpack.c.l.b16 %v926
        %v959 = vunpack.c.l.b16 %v927
        %v960 = vunpack.c.l.b16 %v928
        %v961 = vunpack.c.l.b16 %v929
        %v962 = vunpack.c.l.b16 %v930
        %v963 = vunpack.c.l.b16 %v931
        %v964 = vunpack.c.l.b16 %v932
        %v965 = vunpack.c.l.b16 %v933
        %v966 = vunpack.c.l.b16 %v934
        %v967 = vunpack.c.l.b16 %v935
        %v968 = vpack.c.b16 %v953, %v952
        %v969 = vpack.c.b16 %v955, %v954
        %v970 = vpack.c.b16 %v957, %v956
        %v971 = vpack.c.b16 %v959, %v958
        %v972 = vpack.c.b16 %v961, %v960
        %v973 = vpack.c.b16 %v963, %v962
        %v974 = vpack.c.b16 %v965, %v964
        %v975 = vpack.c.b16 %v967, %v966
        %984 = vmatprep.subr.bf16.mxu0 0
        %985 = vmatpush1.bf16.msra.mxu0 %v975
        %986 = vmatprep.subr.bf16.mxu0 0
        %987 = vmatpush1.bf16.msra.mxu0 %v974
        %988 = vmatprep.subr.bf16.mxu0 0
        %989 = vmatpush1.bf16.msra.mxu0 %v973
        %990 = vmatprep.subr.bf16.mxu0 0
        %991 = vmatpush1.bf16.msra.mxu0 %v972
        %992 = vmatprep.subr.bf16.mxu0 0
        %993 = vmatpush1.bf16.msra.mxu0 %v971
        %994 = vmatprep.subr.bf16.mxu0 0
        %995 = vmatpush1.bf16.msra.mxu0 %v970
        %996 = vmatprep.subr.bf16.mxu0 0
        %997 = vmatpush1.bf16.msra.mxu0 %v969
        %998 = vmatprep.subr.bf16.mxu0 0
        %999 = vmatpush1.bf16.msra.mxu0 %v968
        %1000 = vmatprep.subr.bf16.mxu0 0
        %1001 = vmatpush2.bf16.msra.mxu0 0
        %1002 = vmatprep.subr.bf16.mxu0 0
        %1003 = vmatpush2.bf16.msra.mxu0 0
        %1004 = vmatprep.subr.bf16.mxu0 0
        %1005 = vmatpush2.bf16.msra.mxu0 0
        %1006 = vmatprep.subr.bf16.mxu0 0
        %1007 = vmatpush2.bf16.msra.mxu0 0
        %1008 = vmatprep.subr.bf16.mxu0 0
        %1009 = vmatpush2.bf16.msra.mxu0 0
        %1010 = vmatprep.subr.bf16.mxu0 0
        %1011 = vmatpush2.bf16.msra.mxu0 0
        %1012 = vmatprep.subr.bf16.mxu0 0
        %1013 = vmatpush2.bf16.msra.mxu0 0
        %1014 = vmatprep.subr.bf16.mxu0 0
        %1015 = vmatpush2.bf16.msra.mxu0 0
        %1016 = vmatprep.mubr.bf16.mxu0 0
        %1017 = vmatmul.mubr.bf16.gmra.mxu0 %v919
        %v1018 = vpop.f32.mrf.mxu0
        %v1019 = vadd.f32 0.0, %v1018
        %v1020 = vpop.f32.mrf.mxu0
        %v1021 = vpop.f32.mrf.mxu0
        %v1022 = vadd.f32 0.0, %v1021
        %v1023 = vpop.f32.mrf.mxu0
        %1024 = vdwg.mxu0
        %v1025 = vadd.f32 %v910, %v1019
        %v1026 = vadd.f32 %v910, %v1022
        %s1027 = scalar_lea.vmem %s7, 64
        %v1028 = vld [vmem:[%s1027] sm:$0xf]
        %v1029 = vld [vmem:[%s1027 + $0x4] sm:$0xf]
        %v1030 = vld [vmem:[%s1027 + $0x8] sm:$0xf]
        %v1031 = vld [vmem:[%s1027 + $0xc] sm:$0xf]
        %v1032 = vld [vmem:[%s1027 + $0x10] sm:$0xf]
        %v1033 = vld [vmem:[%s1027 + $0x14] sm:$0xf]
        %v1034 = vld [vmem:[%s1027 + $0x18] sm:$0xf]
        %v1035 = vld [vmem:[%s1027 + $0x1c] sm:$0xf]
        %v1036 = vld [vmem:[%s1027 + $0x20] sm:$0xf]
        %v1037 = vld [vmem:[%s1027 + $0x24] sm:$0xf]
        %v1038 = vld [vmem:[%s1027 + $0x28] sm:$0xf]
        %v1039 = vld [vmem:[%s1027 + $0x2c] sm:$0xf]
        %v1040 = vld [vmem:[%s1027 + $0x30] sm:$0xf]
        %v1041 = vld [vmem:[%s1027 + $0x34] sm:$0xf]
        %v1042 = vld [vmem:[%s1027 + $0x38] sm:$0xf]
        %v1043 = vld [vmem:[%s1027 + $0x3c] sm:$0xf]
        %v1060 = vunpack.c.l.b16 %v1028
        %v1061 = vunpack.c.l.b16 %v1029
        %v1062 = vunpack.c.l.b16 %v1030
        %v1063 = vunpack.c.l.b16 %v1031
        %v1064 = vunpack.c.l.b16 %v1032
        %v1065 = vunpack.c.l.b16 %v1033
        %v1066 = vunpack.c.l.b16 %v1034
        %v1067 = vunpack.c.l.b16 %v1035
        %v1068 = vunpack.c.l.b16 %v1036
        %v1069 = vunpack.c.l.b16 %v1037
        %v1070 = vunpack.c.l.b16 %v1038
        %v1071 = vunpack.c.l.b16 %v1039
        %v1072 = vunpack.c.l.b16 %v1040
        %v1073 = vunpack.c.l.b16 %v1041
        %v1074 = vunpack.c.l.b16 %v1042
        %v1075 = vunpack.c.l.b16 %v1043
        %v1076 = vpack.c.b16 %v1061, %v1060
        %v1077 = vpack.c.b16 %v1063, %v1062
        %v1078 = vpack.c.b16 %v1065, %v1064
        %v1079 = vpack.c.b16 %v1067, %v1066
        %v1080 = vpack.c.b16 %v1069, %v1068
        %v1081 = vpack.c.b16 %v1071, %v1070
        %v1082 = vpack.c.b16 %v1073, %v1072
        %v1083 = vpack.c.b16 %v1075, %v1074
        %1092 = vmatprep.subr.bf16.mxu0 0
        %1093 = vmatpush1.bf16.msra.mxu0 %v1083
        %1094 = vmatprep.subr.bf16.mxu0 0
        %1095 = vmatpush1.bf16.msra.mxu0 %v1082
        %1096 = vmatprep.subr.bf16.mxu0 0
        %1097 = vmatpush1.bf16.msra.mxu0 %v1081
        %1098 = vmatprep.subr.bf16.mxu0 0
        %1099 = vmatpush1.bf16.msra.mxu0 %v1080
        %1100 = vmatprep.subr.bf16.mxu0 0
        %1101 = vmatpush1.bf16.msra.mxu0 %v1079
        %1102 = vmatprep.subr.bf16.mxu0 0
        %1103 = vmatpush1.bf16.msra.mxu0 %v1078
        %1104 = vmatprep.subr.bf16.mxu0 0
        %1105 = vmatpush1.bf16.msra.mxu0 %v1077
        %1106 = vmatprep.subr.bf16.mxu0 0
        %1107 = vmatpush1.bf16.msra.mxu0 %v1076
        %1108 = vmatprep.subr.bf16.mxu0 0
        %1109 = vmatpush2.bf16.msra.mxu0 0
        %1110 = vmatprep.subr.bf16.mxu0 0
        %1111 = vmatpush2.bf16.msra.mxu0 0
        %1112 = vmatprep.subr.bf16.mxu0 0
        %1113 = vmatpush2.bf16.msra.mxu0 0
        %1114 = vmatprep.subr.bf16.mxu0 0
        %1115 = vmatpush2.bf16.msra.mxu0 0
        %1116 = vmatprep.subr.bf16.mxu0 0
        %1117 = vmatpush2.bf16.msra.mxu0 0
        %1118 = vmatprep.subr.bf16.mxu0 0
        %1119 = vmatpush2.bf16.msra.mxu0 0
        %1120 = vmatprep.subr.bf16.mxu0 0
        %1121 = vmatpush2.bf16.msra.mxu0 0
        %1122 = vmatprep.subr.bf16.mxu0 0
        %1123 = vmatpush2.bf16.msra.mxu0 0
        %1124 = vmatprep.mubr.bf16.mxu0 0
        %1125 = vmatmul.mubr.bf16.gmra.mxu0 %v905
        %v1126 = vpop.f32.mrf.mxu0
        %v1127 = vadd.f32 0.0, %v1126
        %v1128 = vpop.f32.mrf.mxu0
        %v1129 = vpop.f32.mrf.mxu0
        %v1130 = vadd.f32 0.0, %v1129
        %v1131 = vpop.f32.mrf.mxu0
        %1132 = vdwg.mxu0
        %v1133 = vadd.f32 %v1025, %v1127
        %v1134 = vadd.f32 %v1026, %v1130
        %v1135 = vrot.slane %v915, 1
        %v1136 = vor.u32 %v912, %v1135
        %v1138 = vsel %vm758, %v1136, 0
        %s1139 = scalar_lea.vmem %s7, 128
        %v1140 = vld [vmem:[%s1139] sm:$0xf]
        %v1141 = vld [vmem:[%s1139 + $0x4] sm:$0xf]
        %v1142 = vld [vmem:[%s1139 + $0x8] sm:$0xf]
        %v1143 = vld [vmem:[%s1139 + $0xc] sm:$0xf]
        %v1144 = vld [vmem:[%s1139 + $0x10] sm:$0xf]
        %v1145 = vld [vmem:[%s1139 + $0x14] sm:$0xf]
        %v1146 = vld [vmem:[%s1139 + $0x18] sm:$0xf]
        %v1147 = vld [vmem:[%s1139 + $0x1c] sm:$0xf]
        %v1148 = vld [vmem:[%s1139 + $0x20] sm:$0xf]
        %v1149 = vld [vmem:[%s1139 + $0x24] sm:$0xf]
        %v1150 = vld [vmem:[%s1139 + $0x28] sm:$0xf]
        %v1151 = vld [vmem:[%s1139 + $0x2c] sm:$0xf]
        %v1152 = vld [vmem:[%s1139 + $0x30] sm:$0xf]
        %v1153 = vld [vmem:[%s1139 + $0x34] sm:$0xf]
        %v1154 = vld [vmem:[%s1139 + $0x38] sm:$0xf]
        %v1155 = vld [vmem:[%s1139 + $0x3c] sm:$0xf]
        %v1172 = vunpack.c.l.b16 %v1140
        %v1173 = vunpack.c.l.b16 %v1141
        %v1174 = vunpack.c.l.b16 %v1142
        %v1175 = vunpack.c.l.b16 %v1143
        %v1176 = vunpack.c.l.b16 %v1144
        %v1177 = vunpack.c.l.b16 %v1145
        %v1178 = vunpack.c.l.b16 %v1146
        %v1179 = vunpack.c.l.b16 %v1147
        %v1180 = vunpack.c.l.b16 %v1148
        %v1181 = vunpack.c.l.b16 %v1149
        %v1182 = vunpack.c.l.b16 %v1150
        %v1183 = vunpack.c.l.b16 %v1151
        %v1184 = vunpack.c.l.b16 %v1152
        %v1185 = vunpack.c.l.b16 %v1153
        %v1186 = vunpack.c.l.b16 %v1154
        %v1187 = vunpack.c.l.b16 %v1155
        %v1188 = vpack.c.b16 %v1173, %v1172
        %v1189 = vpack.c.b16 %v1175, %v1174
        %v1190 = vpack.c.b16 %v1177, %v1176
        %v1191 = vpack.c.b16 %v1179, %v1178
        %v1192 = vpack.c.b16 %v1181, %v1180
        %v1193 = vpack.c.b16 %v1183, %v1182
        %v1194 = vpack.c.b16 %v1185, %v1184
        %v1195 = vpack.c.b16 %v1187, %v1186
        %1204 = vmatprep.subr.bf16.mxu0 0
        %1205 = vmatpush1.bf16.msra.mxu0 %v1195
        %1206 = vmatprep.subr.bf16.mxu0 0
        %1207 = vmatpush1.bf16.msra.mxu0 %v1194
        %1208 = vmatprep.subr.bf16.mxu0 0
        %1209 = vmatpush1.bf16.msra.mxu0 %v1193
        %1210 = vmatprep.subr.bf16.mxu0 0
        %1211 = vmatpush1.bf16.msra.mxu0 %v1192
        %1212 = vmatprep.subr.bf16.mxu0 0
        %1213 = vmatpush1.bf16.msra.mxu0 %v1191
        %1214 = vmatprep.subr.bf16.mxu0 0
        %1215 = vmatpush1.bf16.msra.mxu0 %v1190
        %1216 = vmatprep.subr.bf16.mxu0 0
        %1217 = vmatpush1.bf16.msra.mxu0 %v1189
        %1218 = vmatprep.subr.bf16.mxu0 0
        %1219 = vmatpush1.bf16.msra.mxu0 %v1188
        %1220 = vmatprep.subr.bf16.mxu0 0
        %1221 = vmatpush2.bf16.msra.mxu0 0
        %1222 = vmatprep.subr.bf16.mxu0 0
        %1223 = vmatpush2.bf16.msra.mxu0 0
        %1224 = vmatprep.subr.bf16.mxu0 0
        %1225 = vmatpush2.bf16.msra.mxu0 0
        %1226 = vmatprep.subr.bf16.mxu0 0
        %1227 = vmatpush2.bf16.msra.mxu0 0
        %1228 = vmatprep.subr.bf16.mxu0 0
        %1229 = vmatpush2.bf16.msra.mxu0 0
        %1230 = vmatprep.subr.bf16.mxu0 0
        %1231 = vmatpush2.bf16.msra.mxu0 0
        %1232 = vmatprep.subr.bf16.mxu0 0
        %1233 = vmatpush2.bf16.msra.mxu0 0
        %1234 = vmatprep.subr.bf16.mxu0 0
        %1235 = vmatpush2.bf16.msra.mxu0 0
        %1236 = vmatprep.mubr.bf16.mxu0 0
        %1237 = vmatmul.mubr.bf16.gmra.mxu0 %v1138
        %v1238 = vpop.f32.mrf.mxu0
        %v1239 = vadd.f32 0.0, %v1238
        %v1240 = vpop.f32.mrf.mxu0
        %v1241 = vpop.f32.mrf.mxu0
        %v1242 = vadd.f32 0.0, %v1241
        %v1243 = vpop.f32.mrf.mxu0
        %1244 = vdwg.mxu0
        %v1245 = vadd.f32 %v1133, %v1239
        %v1246 = vadd.f32 %v1134, %v1242
        %v1247 = vmul.f32 %v1245, %v321
        %v1248 = vmul.f32 %v1246, %v322
        %v1249 = vadd.f32 %v1247, %v736
        %v1250 = vadd.f32 %v1248, %v737
        %v1251 = vmul.f32 %v1249, %v321
        %v1252 = vmul.f32 %v1250, %v322
        %v1253 = vlaneseq
        %v1254 = vshrl.u32 %v1253, 7
        %v1255 = vsub.s32 0, %v1254
        %v1256 = vrot.slane %v334, %v1255
        %v1257 = vmul.f32 %v1251, %v1256
        %v1258 = vmul.f32 %v1252, %v1256
        %v1259 = vlaneseq
        %v1260 = vshrl.u32 %v1259, 7
        %v1261 = vsub.s32 0, %v1260
        %v1262 = vrot.slane %v335, %v1261
        %v1263 = vadd.f32 %v1257, %v1262
        %v1264 = vadd.f32 %v1258, %v1262
        %v1265 = vmul.f32 %v1263, %v321
        %v1266 = vmul.f32 %v1264, %v322
        %1267 = vst.msk [vmem:[%s305] sm:$0xff] %vm359, %v1265
        %1268 = vst.msk [vmem:[%s305 + $0x8] sm:$0xff] %vm359, %v1266
        %s1269 = sand.u32 %s210, 1
        %s1270 = scalar_lea.sflag [#allocation5], %s1269
        %s1271 = sand.u32 %s210, 1
        %s1272 = smul.addr %s1271, 16
        %s1273 = scalar_lea.vmem [#allocation4], %s1272
        // Predicated region
        $region53: #{tpu_custom_call.1} parent=51 // pred_check
          %p1274 = pneg %p220
        $region54: #{tpu_custom_call.1} parent=51 // pred_check_branch
          %1276 = sbr.rel (%p1274) target = $region56
        $region55: #{tpu_custom_call.1} parent=51 // pred_region
          %s1278 = ssub.s32 256, 256
          %1279 = vsyncadd %s1270, %s1278
          %s1280 = smul.addr %s29, 2
          %s1281 = smul.addr %s1280, 128
          %s1282 = scalar_lea.hbm %s9, %s1281
          %s1283 = sshll.u32 %s1273, 4
          %s1284 = int_to_ptr.vmem [resolvable:$true] %s1283
          %1289 = dma.vmem_to_hbm [thread:$0]  %s1284, 256, %s1282, %s1270, 128, 128, 8
        $region56: #{tpu_custom_call.1} parent=51 // pred_fallthru
          _
      $region52: #{tpu_custom_call.1} parent=5 // pred_fallthru
        _
      %p1290 = scmp.le.s32.totalorder 2, %s24
      // Predicated region
      $region57: #{tpu_custom_call.1} parent=5 // pred_check
        %p1291 = pneg %p1290
      $region58: #{tpu_custom_call.1} parent=5 // pred_check_branch
        %1293 = sbr.rel (%p1291) target = $region60
      $region59: #{tpu_custom_call.1} parent=5 // pred_region
        %s1294 = ssub.s32 %s24, 2
        // Predicated region
        $region61: #{tpu_custom_call.1} parent=59 // pred_check
          %p1295 = pneg %p226
        $region62: #{tpu_custom_call.1} parent=59 // pred_check_branch
          %1297 = sbr.rel (%p1295) target = $region64
        $region63: #{tpu_custom_call.1} parent=59 // pred_region
          %s1298 = sand.u32 %s211, 1
          %s1299 = scalar_lea.sflag [#allocation5], %s1298
          %s1300 = sand.u32 %s211, 1
          %s1301 = smul.addr %s1300, 16
          %s1302 = scalar_lea.vmem [#allocation4], %s1301
          %1303 = dma.done %s1299, 256
        $region64: #{tpu_custom_call.1} parent=59 // pred_fallthru
          _
      $region60: #{tpu_custom_call.1} parent=5 // pred_fallthru
        _
    $region6: #{tpu_custom_call.1} parent=1 // loop_footer
      %s28 = sadd.s32 1, %s24
    $region7: #{tpu_custom_call.1} parent=1 // loop_footer_branch
      %23 = sbr.rel target = $region3
    $region8: #{tpu_custom_call.1} parent=1 // loop_exit
      _
    %1304 = vsyncpa [#allocation5], 1
    %s1305 = scalar_lea.sflag [#allocation5], 1
    %1306 = vsyncpa %s1305, 1

</llo_original>
